<compile_context>
chip_gen: v6e
topology: v6e:2x2x1
jax: 0.10.0
libtpu: 0.0.40
codegen_flags: <defaults>
</compile_context>

<pallas_src>
import math
import functools

import jax
import jax.numpy as jnp
from jax import lax
from jax.experimental import pallas as pl
from jax.experimental.pallas import tpu as pltpu


# ----------------------------------------------------------------------------
# helpers
# ----------------------------------------------------------------------------
def sinusoidal_pe(length, dim):
    pos = jnp.arange(length, dtype=jnp.float32)[:, None]
    i = jnp.arange(dim // 2, dtype=jnp.float32)[None, :]
    angle = pos / jnp.power(10000.0, 2.0 * i / dim)
    pe = jnp.zeros((length, dim), dtype=jnp.float32)
    pe = pe.at[:, 0::2].set(jnp.sin(angle))
    pe = pe.at[:, 1::2].set(jnp.cos(angle))
    return pe


# ----------------------------------------------------------------------------
# Pallas kernel: whole decoder layer fused in one VMEM-resident kernel
# ----------------------------------------------------------------------------
def decoder_layer_kernel(
    qflat_ref, stack1_ref, ope_ref, memkv_ref,
    wqkv1_ref, wo1_ref, wq2_ref, wkv2_ref, wo2_ref,
    g1_ref, b1_ref, g2_ref, b2_ref, g3_ref, b3_ref,
    wf1_ref, bf1_ref, wf2_ref, bf2_ref,
    out_ref, attn_ref,
    *, num_heads, mxu_dtype, approx_recip,
):
    f32 = jnp.float32
    BLq, D = qflat_ref.shape            # (B*Lq, D)
    Lq = stack1_ref.shape[0] // 2       # stack1 = [q0+ope0 ; q0]
    Lk = memkv_ref.shape[0] // 2        # memkv  = [mem0+pe ; mem0]
    B = BLq // Lq
    hd = D // num_heads
    scale = 1.0 / math.sqrt(hd)

    def mm(a, b):
        # MXU dot; optionally feed bf16 operands (f32 accumulation always).
        return jnp.dot(a.astype(mxu_dtype), b.astype(mxu_dtype),
                       preferred_element_type=f32)

    def softmax_rows(s):
        s = s - jnp.max(s, axis=-1, keepdims=True)
        p = jnp.exp(s)
        inv = pl.reciprocal(jnp.sum(p, axis=-1, keepdims=True),
                            approx=approx_recip)
        return p * inv                                   # multiply, not divide

    def rep_rows(x):
        # broadcast the batch-0 attention result across the stacked batch rows
        return jnp.concatenate([x] * B, axis=0) if B > 1 else x

    def layer_norm(x, g_ref, b_ref):
        mu = jnp.mean(x, axis=-1, keepdims=True)
        var = jnp.mean((x - mu) ** 2, axis=-1, keepdims=True)
        return (x - mu) * lax.rsqrt(var + 1e-5) * g_ref[...] + b_ref[...]

    def mha_core(qp, kp, vp, wo_ref):
        # qp (Lq, D) pre-scaled; kp, vp (Lk, D).
        kpT = kp.T                                       # single XLU transpose
        for h in range(num_heads):                       # static unroll
            lo = h * hd
            hi = lo + hd
            s = mm(qp[:, lo:hi], kpT[lo:hi, :])          # (Lq, Lk)
            p = softmax_rows(s)
            attn_ref[:, lo:hi] = mm(p, vp[:, lo:hi])     # per-head out -> scratch
        return mm(attn_ref[...], wo_ref[...])            # one output projection

    # ---- block 1: self-attention + residual + LayerNorm --------------------
    r1 = mm(stack1_ref[...], wqkv1_ref[...])             # (2*Lq, 3D) fused QKV
    qp1 = r1[:Lq, 0:D] * scale                           # (q0+ope0) @ Wq, scaled
    kp1 = r1[:Lq, D:2 * D]                               # (q0+ope0) @ Wk
    vp1 = r1[Lq:, 2 * D:3 * D]                           # q0 @ Wv
    a1 = mha_core(qp1, kp1, vp1, wo1_ref)                # (Lq, D)

    x1 = layer_norm(rep_rows(a1) + qflat_ref[...], g1_ref, b1_ref)   # (B*Lq, D)

    # ---- block 2: encoder-decoder attention + residual + LayerNorm ---------
    q2_in = x1[:Lq, :] + ope_ref[...]                    # batch-0 query rows
    qp2 = mm(q2_in, wq2_ref[...]) * scale
    kv = mm(memkv_ref[...], wkv2_ref[...])               # (2*Lk, 2D) fused KV
    kp2 = kv[:Lk, 0:D]                                   # (mem0+pe) @ Wk
    vp2 = kv[Lk:, D:2 * D]                               # mem0 @ Wv
    a2 = mha_core(qp2, kp2, vp2, wo2_ref)

    x2 = layer_norm(rep_rows(a2) + x1, g2_ref, b2_ref)

    # ---- block 3: feed-forward + residual + LayerNorm (batch-stacked) ------
    hdn = jnp.maximum(mm(x2, wf1_ref[...]) + bf1_ref[...], 0.0)
    ffo = mm(hdn, wf2_ref[...]) + bf2_ref[...]
    out_ref[...] = layer_norm(ffo + x2, g3_ref, b3_ref)  # single full store


# ----------------------------------------------------------------------------
# wrapper (jitted: PE constant-folds, weight concat / input stacking fuse)
# ----------------------------------------------------------------------------
@functools.partial(jax.jit,
                   static_argnames=("num_heads", "use_bf16_matmul",
                                    "approx_reciprocal"))
def decoder_layer(q, ope, mem, params, *, num_heads,
                  use_bf16_matmul=False, approx_reciprocal=False):
    B, Lq, D = q.shape
    Lk = mem.shape[1]
    pe = sinusoidal_pe(Lk, D)

    q0, ope0, mem0 = q[0], ope[0], mem[0]
    stack1 = jnp.concatenate([q0 + ope0, q0], axis=0)          # (2*Lq, D)
    memkv = jnp.concatenate([mem0 + pe, mem0], axis=0)         # (2*Lk, D)
    wqkv1 = jnp.concatenate(
        [params["wq1"], params["wk1"], params["wv1"]], axis=1)  # (D, 3D)
    wkv2 = jnp.concatenate([params["wk2"], params["wv2"]], axis=1)  # (D, 2D)
    q_flat = q.reshape(B * Lq, D)

    args = (
        q_flat, stack1, ope0, memkv,
        wqkv1, params["wo1"], params["wq2"], wkv2, params["wo2"],
        params["g1"], params["b1"], params["g2"], params["b2"],
        params["g3"], params["b3"],
        params["wf1"], params["bf1"], params["wf2"], params["bf2"],
    )

    kernel = functools.partial(
        decoder_layer_kernel,
        num_heads=num_heads,
        mxu_dtype=jnp.bfloat16 if use_bf16_matmul else jnp.float32,
        approx_recip=approx_reciprocal,
    )
    out_flat = pl.pallas_call(
        kernel,
        out_shape=jax.ShapeDtypeStruct((B * Lq, D), jnp.float32),
        in_specs=[pl.BlockSpec(memory_space=pltpu.MemorySpace.VMEM)] * len(args),
        out_specs=pl.BlockSpec(memory_space=pltpu.MemorySpace.VMEM),
        scratch_shapes=[pltpu.VMEM((Lq, D), jnp.float32)],
    )(*args)
    return out_flat.reshape(B, Lq, D)


# ----------------------------------------------------------------------------
# pure-JAX reference (mirrors PyTorch semantics exactly) for a sanity check
# ----------------------------------------------------------------------------
def decoder_layer_ref(q, ope, mem, params, *, num_heads):
    B, Lq, D = q.shape
    Lk = mem.shape[1]
    hd = D // num_heads
    pe = sinusoidal_pe(Lk, D)

    def mha_full(qin, kin, vin, wq, wk, wv, wo):
        qp, kp, vp = qin @ wq, kin @ wk, vin @ wv
        qh = qp.reshape(B, -1, num_heads, hd).transpose(0, 2, 1, 3)
        kh = kp.reshape(B, -1, num_heads, hd).transpose(0, 2, 1, 3)
        vh = vp.reshape(B, -1, num_heads, hd).transpose(0, 2, 1, 3)
        s = jnp.einsum("bhid,bhjd->bhij", qh, kh) / math.sqrt(hd)
        p = jax.nn.softmax(s, axis=-1)
        o = jnp.einsum("bhij,bhjd->bhid", p, vh)
        o = o.transpose(0, 2, 1, 3).reshape(B, -1, D)
        return o @ wo

    def ln(x, g, b):
        mu = x.mean(-1, keepdims=True)
        var = ((x - mu) ** 2).mean(-1, keepdims=True)
        return (x - mu) / jnp.sqrt(var + 1e-5) * g + b

    a1 = mha_full(q + ope, q + ope, q,
                  params["wq1"], params["wk1"], params["wv1"], params["wo1"])[0]
    x1 = ln(a1[None] + q, params["g1"], params["b1"])
    a2 = mha_full(x1 + ope, mem + pe[None], mem,
                  params["wq2"], params["wk2"], params["wv2"], params["wo2"])[0]
    x2 = ln(a2[None] + x1, params["g2"], params["b2"])
    ff = jnp.maximum(x2 @ params["wf1"] + params["bf1"], 0.0) @ params["wf2"] + params["bf2"]
    return ln(ff + x2, params["g3"], params["b3"])


# ----------------------------------------------------------------------------
if __name__ == "__main__":
    B, Lq, Lk, D, H, LAT = 2, 8, 16, 32, 4, 64

    key = jax.random.PRNGKey(0)
    ks = jax.random.split(key, 16)

    q = jax.random.normal(ks[0], (B, Lq, D), jnp.float32)
    ope = jax.random.normal(ks[1], (B, Lq, D), jnp.float32)  # output positional encoding
    mem = jax.random.normal(ks[2], (B, Lk, D), jnp.float32)  # encoder memory

    def w(k, shape, s=0.1):
        return (jax.random.normal(k, shape, jnp.float32) * s).astype(jnp.float32)

    params = {
        "wq1": w(ks[3], (D, D)), "wk1": w(ks[4], (D, D)),
        "wv1": w(ks[5], (D, D)), "wo1": w(ks[6], (D, D)),
        "wq2": w(ks[7], (D, D)), "wk2": w(ks[8], (D, D)),
        "wv2": w(ks[9], (D, D)), "wo2": w(ks[10], (D, D)),
        "g1": jnp.ones((1, D), jnp.float32), "b1": jnp.zeros((1, D), jnp.float32),
        "g2": jnp.ones((1, D), jnp.float32), "b2": jnp.zeros((1, D), jnp.float32),
        "g3": jnp.ones((1, D), jnp.float32), "b3": jnp.zeros((1, D), jnp.float32),
        "wf1": w(ks[11], (D, LAT)), "bf1": w(ks[12], (1, LAT)),
        "wf2": w(ks[13], (LAT, D)), "bf2": w(ks[14], (1, D)),
    }

    ref = decoder_layer_ref(q, ope, mem, params, num_heads=H)

    # precise path: f32 MXU operands, exact reciprocal -> tight tolerance
    out = decoder_layer(q, ope, mem, params, num_heads=H)
    out = jax.block_until_ready(out)
    assert out.shape == (B, Lq, D)
    assert jnp.allclose(out, ref, atol=1e-4, rtol=1e-4), "mismatch vs reference (f32)"

    # fast path (v6e/v7x): bf16 operands to the MXU + approx EUP reciprocal.
    # Loose tolerance is expected: bf16 has ~3 significant decimal digits.
    out_fast = decoder_layer(q, ope, mem, params, num_heads=H,
                             use_bf16_matmul=True, approx_reciprocal=True)
    out_fast = jax.block_until_ready(out_fast)
    assert jnp.allclose(out_fast, ref, atol=5e-2, rtol=5e-2), \
        "mismatch vs reference (bf16 fast path)"

    print("KERNEL_OK")
</pallas_src>

<mosaic_0001>
module attributes {stable_mosaic.version = 11 : i64} {
  func.func @decoder_layer_kernel(%arg0: memref<16x32xf32, #tpu.memory_space<vmem>>, %arg1: memref<16x32xf32, #tpu.memory_space<vmem>>, %arg2: memref<8x32xf32, #tpu.memory_space<vmem>>, %arg3: memref<32x32xf32, #tpu.memory_space<vmem>>, %arg4: memref<32x96xf32, #tpu.memory_space<vmem>>, %arg5: memref<32x32xf32, #tpu.memory_space<vmem>>, %arg6: memref<32x32xf32, #tpu.memory_space<vmem>>, %arg7: memref<32x64xf32, #tpu.memory_space<vmem>>, %arg8: memref<32x32xf32, #tpu.memory_space<vmem>>, %arg9: memref<1x32xf32, #tpu.memory_space<vmem>>, %arg10: memref<1x32xf32, #tpu.memory_space<vmem>>, %arg11: memref<1x32xf32, #tpu.memory_space<vmem>>, %arg12: memref<1x32xf32, #tpu.memory_space<vmem>>, %arg13: memref<1x32xf32, #tpu.memory_space<vmem>>, %arg14: memref<1x32xf32, #tpu.memory_space<vmem>>, %arg15: memref<32x64xf32, #tpu.memory_space<vmem>>, %arg16: memref<1x64xf32, #tpu.memory_space<vmem>>, %arg17: memref<64x32xf32, #tpu.memory_space<vmem>>, %arg18: memref<1x32xf32, #tpu.memory_space<vmem>>, %arg19: memref<16x32xf32, #tpu.memory_space<vmem>>, %arg20: memref<8x32xf32, #tpu.memory_space<vmem>>) attributes {dimension_semantics = [], scalar_prefetch = 0 : i64, scratch_operands = 1 : i64, tpu.core_type = #tpu.core_type<tc>} {
    %c0 = arith.constant 0 : index
    %c0_0 = arith.constant 0 : index
    %0 = vector.load %arg1[%c0, %c0_0] : memref<16x32xf32, #tpu.memory_space<vmem>>, vector<16x32xf32>
    %c0_1 = arith.constant 0 : index
    %c0_2 = arith.constant 0 : index
    %1 = vector.load %arg4[%c0_1, %c0_2] : memref<32x96xf32, #tpu.memory_space<vmem>>, vector<32x96xf32>
    %cst = arith.constant dense<0.000000e+00> : vector<16x96xf32>
    %2 = tpu.matmul %0, %1, %cst {dimension_numbers = #tpu.dot_dimension_numbers<[1], [0], [0], [1], [0, 0, 1, 1], [], []>} : vector<16x32xf32>, vector<32x96xf32>, vector<16x96xf32> -> vector<16x96xf32>
    %3 = vector.extract_strided_slice %2 {offsets = [0, 0], sizes = [8, 32], strides = [1, 1]} : vector<16x96xf32> to vector<8x32xf32>
    %cst_3 = arith.constant 0.353553385 : f32
    %4 = vector.broadcast %cst_3 : f32 to vector<8x32xf32>
    %5 = arith.mulf %3, %4 : vector<8x32xf32>
    %6 = vector.extract_strided_slice %2 {offsets = [0, 32], sizes = [8, 32], strides = [1, 1]} : vector<16x96xf32> to vector<8x32xf32>
    %7 = vector.extract_strided_slice %2 {offsets = [8, 64], sizes = [8, 32], strides = [1, 1]} : vector<16x96xf32> to vector<8x32xf32>
    %8 = tpu.transpose %6, [1, 0] : vector<8x32xf32> -> vector<32x8xf32>
    %9 = vector.extract_strided_slice %5 {offsets = [0, 0], sizes = [8, 8], strides = [1, 1]} : vector<8x32xf32> to vector<8x8xf32>
    %10 = vector.extract_strided_slice %8 {offsets = [0, 0], sizes = [8, 8], strides = [1, 1]} : vector<32x8xf32> to vector<8x8xf32>
    %cst_4 = arith.constant dense<0.000000e+00> : vector<8x8xf32>
    %11 = tpu.matmul %9, %10, %cst_4 {dimension_numbers = #tpu.dot_dimension_numbers<[1], [0], [0], [1], [0, 0, 1, 1], [], []>} : vector<8x8xf32>, vector<8x8xf32>, vector<8x8xf32> -> vector<8x8xf32>
    %cst_5 = arith.constant dense<0xFF800000> : vector<8xf32>
    %12 = vector.multi_reduction <maximumf>, %11, %cst_5 [1] : vector<8x8xf32> to vector<8xf32>
    %13 = vector.shape_cast %12 : vector<8xf32> to vector<8x1xf32>
    %14 = vector.broadcast %13 : vector<8x1xf32> to vector<8x8xf32>
    %15 = arith.subf %11, %14 : vector<8x8xf32>
    %16 = math.exp %15 : vector<8x8xf32>
    %cst_6 = arith.constant dense<0.000000e+00> : vector<8xf32>
    %17 = vector.multi_reduction <add>, %16, %cst_6 [1] : vector<8x8xf32> to vector<8xf32>
    %18 = vector.shape_cast %17 : vector<8xf32> to vector<8x1xf32>
    %19 = tpu.reciprocal %18 : vector<8x1xf32> -> vector<8x1xf32>
    %20 = vector.broadcast %19 : vector<8x1xf32> to vector<8x8xf32>
    %21 = arith.mulf %16, %20 : vector<8x8xf32>
    %22 = vector.extract_strided_slice %7 {offsets = [0, 0], sizes = [8, 8], strides = [1, 1]} : vector<8x32xf32> to vector<8x8xf32>
    %cst_7 = arith.constant dense<0.000000e+00> : vector<8x8xf32>
    %23 = tpu.matmul %21, %22, %cst_7 {dimension_numbers = #tpu.dot_dimension_numbers<[1], [0], [0], [1], [0, 0, 1, 1], [], []>} : vector<8x8xf32>, vector<8x8xf32>, vector<8x8xf32> -> vector<8x8xf32>
    %c0_8 = arith.constant 0 : index
    %c0_9 = arith.constant 0 : index
    %24 = vector.load %arg20[%c0_8, %c0_9] : memref<8x32xf32, #tpu.memory_space<vmem>>, vector<8x8xf32>
    tpu.vector_store %arg20[%c0_8, %c0_9], %23 {strides = array<i32>} : memref<8x32xf32, #tpu.memory_space<vmem>>, vector<8x8xf32>,
    %25 = vector.extract_strided_slice %5 {offsets = [0, 8], sizes = [8, 8], strides = [1, 1]} : vector<8x32xf32> to vector<8x8xf32>
    %26 = vector.extract_strided_slice %8 {offsets = [8, 0], sizes = [8, 8], strides = [1, 1]} : vector<32x8xf32> to vector<8x8xf32>
    %cst_10 = arith.constant dense<0.000000e+00> : vector<8x8xf32>
    %27 = tpu.matmul %25, %26, %cst_10 {dimension_numbers = #tpu.dot_dimension_numbers<[1], [0], [0], [1], [0, 0, 1, 1], [], []>} : vector<8x8xf32>, vector<8x8xf32>, vector<8x8xf32> -> vector<8x8xf32>
    %cst_11 = arith.constant dense<0xFF800000> : vector<8xf32>
    %28 = vector.multi_reduction <maximumf>, %27, %cst_11 [1] : vector<8x8xf32> to vector<8xf32>
    %29 = vector.shape_cast %28 : vector<8xf32> to vector<8x1xf32>
    %30 = vector.broadcast %29 : vector<8x1xf32> to vector<8x8xf32>
    %31 = arith.subf %27, %30 : vector<8x8xf32>
    %32 = math.exp %31 : vector<8x8xf32>
    %cst_12 = arith.constant dense<0.000000e+00> : vector<8xf32>
    %33 = vector.multi_reduction <add>, %32, %cst_12 [1] : vector<8x8xf32> to vector<8xf32>
    %34 = vector.shape_cast %33 : vector<8xf32> to vector<8x1xf32>
    %35 = tpu.reciprocal %34 : vector<8x1xf32> -> vector<8x1xf32>
    %36 = vector.broadcast %35 : vector<8x1xf32> to vector<8x8xf32>
    %37 = arith.mulf %32, %36 : vector<8x8xf32>
    %38 = vector.extract_strided_slice %7 {offsets = [0, 8], sizes = [8, 8], strides = [1, 1]} : vector<8x32xf32> to vector<8x8xf32>
    %cst_13 = arith.constant dense<0.000000e+00> : vector<8x8xf32>
    %39 = tpu.matmul %37, %38, %cst_13 {dimension_numbers = #tpu.dot_dimension_numbers<[1], [0], [0], [1], [0, 0, 1, 1], [], []>} : vector<8x8xf32>, vector<8x8xf32>, vector<8x8xf32> -> vector<8x8xf32>
    %c0_14 = arith.constant 0 : index
    %c8 = arith.constant 8 : index
    %40 = vector.load %arg20[%c0_14, %c8] : memref<8x32xf32, #tpu.memory_space<vmem>>, vector<8x8xf32>
    tpu.vector_store %arg20[%c0_14, %c8], %39 {strides = array<i32>} : memref<8x32xf32, #tpu.memory_space<vmem>>, vector<8x8xf32>,
    %41 = vector.extract_strided_slice %5 {offsets = [0, 16], sizes = [8, 8], strides = [1, 1]} : vector<8x32xf32> to vector<8x8xf32>
    %42 = vector.extract_strided_slice %8 {offsets = [16, 0], sizes = [8, 8], strides = [1, 1]} : vector<32x8xf32> to vector<8x8xf32>
    %cst_15 = arith.constant dense<0.000000e+00> : vector<8x8xf32>
    %43 = tpu.matmul %41, %42, %cst_15 {dimension_numbers = #tpu.dot_dimension_numbers<[1], [0], [0], [1], [0, 0, 1, 1], [], []>} : vector<8x8xf32>, vector<8x8xf32>, vector<8x8xf32> -> vector<8x8xf32>
    %cst_16 = arith.constant dense<0xFF800000> : vector<8xf32>
    %44 = vector.multi_reduction <maximumf>, %43, %cst_16 [1] : vector<8x8xf32> to vector<8xf32>
    %45 = vector.shape_cast %44 : vector<8xf32> to vector<8x1xf32>
    %46 = vector.broadcast %45 : vector<8x1xf32> to vector<8x8xf32>
    %47 = arith.subf %43, %46 : vector<8x8xf32>
    %48 = math.exp %47 : vector<8x8xf32>
    %cst_17 = arith.constant dense<0.000000e+00> : vector<8xf32>
    %49 = vector.multi_reduction <add>, %48, %cst_17 [1] : vector<8x8xf32> to vector<8xf32>
    %50 = vector.shape_cast %49 : vector<8xf32> to vector<8x1xf32>
    %51 = tpu.reciprocal %50 : vector<8x1xf32> -> vector<8x1xf32>
    %52 = vector.broadcast %51 : vector<8x1xf32> to vector<8x8xf32>
    %53 = arith.mulf %48, %52 : vector<8x8xf32>
    %54 = vector.extract_strided_slice %7 {offsets = [0, 16], sizes = [8, 8], strides = [1, 1]} : vector<8x32xf32> to vector<8x8xf32>
    %cst_18 = arith.constant dense<0.000000e+00> : vector<8x8xf32>
    %55 = tpu.matmul %53, %54, %cst_18 {dimension_numbers = #tpu.dot_dimension_numbers<[1], [0], [0], [1], [0, 0, 1, 1], [], []>} : vector<8x8xf32>, vector<8x8xf32>, vector<8x8xf32> -> vector<8x8xf32>
    %c0_19 = arith.constant 0 : index
    %c16 = arith.constant 16 : index
    %56 = vector.load %arg20[%c0_19, %c16] : memref<8x32xf32, #tpu.memory_space<vmem>>, vector<8x8xf32>
    tpu.vector_store %arg20[%c0_19, %c16], %55 {strides = array<i32>} : memref<8x32xf32, #tpu.memory_space<vmem>>, vector<8x8xf32>,
    %57 = vector.extract_strided_slice %5 {offsets = [0, 24], sizes = [8, 8], strides = [1, 1]} : vector<8x32xf32> to vector<8x8xf32>
    %58 = vector.extract_strided_slice %8 {offsets = [24, 0], sizes = [8, 8], strides = [1, 1]} : vector<32x8xf32> to vector<8x8xf32>
    %cst_20 = arith.constant dense<0.000000e+00> : vector<8x8xf32>
    %59 = tpu.matmul %57, %58, %cst_20 {dimension_numbers = #tpu.dot_dimension_numbers<[1], [0], [0], [1], [0, 0, 1, 1], [], []>} : vector<8x8xf32>, vector<8x8xf32>, vector<8x8xf32> -> vector<8x8xf32>
    %cst_21 = arith.constant dense<0xFF800000> : vector<8xf32>
    %60 = vector.multi_reduction <maximumf>, %59, %cst_21 [1] : vector<8x8xf32> to vector<8xf32>
    %61 = vector.shape_cast %60 : vector<8xf32> to vector<8x1xf32>
    %62 = vector.broadcast %61 : vector<8x1xf32> to vector<8x8xf32>
    %63 = arith.subf %59, %62 : vector<8x8xf32>
    %64 = math.exp %63 : vector<8x8xf32>
    %cst_22 = arith.constant dense<0.000000e+00> : vector<8xf32>
    %65 = vector.multi_reduction <add>, %64, %cst_22 [1] : vector<8x8xf32> to vector<8xf32>
    %66 = vector.shape_cast %65 : vector<8xf32> to vector<8x1xf32>
    %67 = tpu.reciprocal %66 : vector<8x1xf32> -> vector<8x1xf32>
    %68 = vector.broadcast %67 : vector<8x1xf32> to vector<8x8xf32>
    %69 = arith.mulf %64, %68 : vector<8x8xf32>
    %70 = vector.extract_strided_slice %7 {offsets = [0, 24], sizes = [8, 8], strides = [1, 1]} : vector<8x32xf32> to vector<8x8xf32>
    %cst_23 = arith.constant dense<0.000000e+00> : vector<8x8xf32>
    %71 = tpu.matmul %69, %70, %cst_23 {dimension_numbers = #tpu.dot_dimension_numbers<[1], [0], [0], [1], [0, 0, 1, 1], [], []>} : vector<8x8xf32>, vector<8x8xf32>, vector<8x8xf32> -> vector<8x8xf32>
    %c0_24 = arith.constant 0 : index
    %c24 = arith.constant 24 : index
    %72 = vector.load %arg20[%c0_24, %c24] : memref<8x32xf32, #tpu.memory_space<vmem>>, vector<8x8xf32>
    tpu.vector_store %arg20[%c0_24, %c24], %71 {strides = array<i32>} : memref<8x32xf32, #tpu.memory_space<vmem>>, vector<8x8xf32>,
    %c0_25 = arith.constant 0 : index
    %c0_26 = arith.constant 0 : index
    %73 = vector.load %arg20[%c0_25, %c0_26] : memref<8x32xf32, #tpu.memory_space<vmem>>, vector<8x32xf32>
    %c0_27 = arith.constant 0 : index
    %c0_28 = arith.constant 0 : index
    %74 = vector.load %arg5[%c0_27, %c0_28] : memref<32x32xf32, #tpu.memory_space<vmem>>, vector<32x32xf32>
    %cst_29 = arith.constant dense<0.000000e+00> : vector<8x32xf32>
    %75 = tpu.matmul %73, %74, %cst_29 {dimension_numbers = #tpu.dot_dimension_numbers<[1], [0], [0], [1], [0, 0, 1, 1], [], []>} : vector<8x32xf32>, vector<32x32xf32>, vector<8x32xf32> -> vector<8x32xf32>
    %76 = tpu.concatenate %75, %75 in 0 : vector<8x32xf32>, vector<8x32xf32> -> vector<16x32xf32>
    %c0_30 = arith.constant 0 : index
    %c0_31 = arith.constant 0 : index
    %77 = vector.load %arg0[%c0_30, %c0_31] : memref<16x32xf32, #tpu.memory_space<vmem>>, vector<16x32xf32>
    %78 = arith.addf %76, %77 : vector<16x32xf32>
    %cst_32 = arith.constant dense<0.000000e+00> : vector<16xf32>
    %79 = vector.multi_reduction <add>, %78, %cst_32 [1] : vector<16x32xf32> to vector<16xf32>
    %80 = vector.shape_cast %79 : vector<16xf32> to vector<16x1xf32>
    %cst_33 = arith.constant 3.200000e+01 : f32
    %81 = vector.broadcast %cst_33 : f32 to vector<16x1xf32>
    %82 = arith.divf %80, %81 : vector<16x1xf32>
    %83 = vector.broadcast %82 : vector<16x1xf32> to vector<16x32xf32>
    %84 = arith.subf %78, %83 : vector<16x32xf32>
    %85 = arith.mulf %84, %84 : vector<16x32xf32>
    %cst_34 = arith.constant dense<0.000000e+00> : vector<16xf32>
    %86 = vector.multi_reduction <add>, %85, %cst_34 [1] : vector<16x32xf32> to vector<16xf32>
    %87 = vector.shape_cast %86 : vector<16xf32> to vector<16x1xf32>
    %cst_35 = arith.constant 3.200000e+01 : f32
    %88 = vector.broadcast %cst_35 : f32 to vector<16x1xf32>
    %89 = arith.divf %87, %88 : vector<16x1xf32>
    %90 = vector.broadcast %82 : vector<16x1xf32> to vector<16x32xf32>
    %91 = arith.subf %78, %90 : vector<16x32xf32>
    %cst_36 = arith.constant 9.99999974E-6 : f32
    %92 = vector.broadcast %cst_36 : f32 to vector<16x1xf32>
    %93 = arith.addf %89, %92 : vector<16x1xf32>
    %94 = math.rsqrt %93 : vector<16x1xf32>
    %95 = vector.broadcast %94 : vector<16x1xf32> to vector<16x32xf32>
    %96 = arith.mulf %91, %95 : vector<16x32xf32>
    %c0_37 = arith.constant 0 : index
    %c0_38 = arith.constant 0 : index
    %97 = vector.load %arg9[%c0_37, %c0_38] : memref<1x32xf32, #tpu.memory_space<vmem>>, vector<1x32xf32>
    %98 = vector.broadcast %97 : vector<1x32xf32> to vector<16x32xf32>
    %99 = arith.mulf %96, %98 : vector<16x32xf32>
    %c0_39 = arith.constant 0 : index
    %c0_40 = arith.constant 0 : index
    %100 = vector.load %arg10[%c0_39, %c0_40] : memref<1x32xf32, #tpu.memory_space<vmem>>, vector<1x32xf32>
    %101 = vector.broadcast %100 : vector<1x32xf32> to vector<16x32xf32>
    %102 = arith.addf %99, %101 : vector<16x32xf32>
    %103 = vector.extract_strided_slice %102 {offsets = [0, 0], sizes = [8, 32], strides = [1, 1]} : vector<16x32xf32> to vector<8x32xf32>
    %c0_41 = arith.constant 0 : index
    %c0_42 = arith.constant 0 : index
    %104 = vector.load %arg2[%c0_41, %c0_42] : memref<8x32xf32, #tpu.memory_space<vmem>>, vector<8x32xf32>
    %105 = arith.addf %103, %104 : vector<8x32xf32>
    %c0_43 = arith.constant 0 : index
    %c0_44 = arith.constant 0 : index
    %106 = vector.load %arg6[%c0_43, %c0_44] : memref<32x32xf32, #tpu.memory_space<vmem>>, vector<32x32xf32>
    %cst_45 = arith.constant dense<0.000000e+00> : vector<8x32xf32>
    %107 = tpu.matmul %105, %106, %cst_45 {dimension_numbers = #tpu.dot_dimension_numbers<[1], [0], [0], [1], [0, 0, 1, 1], [], []>} : vector<8x32xf32>, vector<32x32xf32>, vector<8x32xf32> -> vector<8x32xf32>
    %cst_46 = arith.constant 0.353553385 : f32
    %108 = vector.broadcast %cst_46 : f32 to vector<8x32xf32>
    %109 = arith.mulf %107, %108 : vector<8x32xf32>
    %c0_47 = arith.constant 0 : index
    %c0_48 = arith.constant 0 : index
    %110 = vector.load %arg3[%c0_47, %c0_48] : memref<32x32xf32, #tpu.memory_space<vmem>>, vector<32x32xf32>
    %c0_49 = arith.constant 0 : index
    %c0_50 = arith.constant 0 : index
    %111 = vector.load %arg7[%c0_49, %c0_50] : memref<32x64xf32, #tpu.memory_space<vmem>>, vector<32x64xf32>
    %cst_51 = arith.constant dense<0.000000e+00> : vector<32x64xf32>
    %112 = tpu.matmul %110, %111, %cst_51 {dimension_numbers = #tpu.dot_dimension_numbers<[1], [0], [0], [1], [0, 0, 1, 1], [], []>} : vector<32x32xf32>, vector<32x64xf32>, vector<32x64xf32> -> vector<32x64xf32>
    %113 = vector.extract_strided_slice %112 {offsets = [0, 0], sizes = [16, 32], strides = [1, 1]} : vector<32x64xf32> to vector<16x32xf32>
    %114 = vector.extract_strided_slice %112 {offsets = [16, 32], sizes = [16, 32], strides = [1, 1]} : vector<32x64xf32> to vector<16x32xf32>
    %115 = tpu.transpose %113, [1, 0] : vector<16x32xf32> -> vector<32x16xf32>
    %116 = vector.extract_strided_slice %109 {offsets = [0, 0], sizes = [8, 8], strides = [1, 1]} : vector<8x32xf32> to vector<8x8xf32>
    %117 = vector.extract_strided_slice %115 {offsets = [0, 0], sizes = [8, 16], strides = [1, 1]} : vector<32x16xf32> to vector<8x16xf32>
    %cst_52 = arith.constant dense<0.000000e+00> : vector<8x16xf32>
    %118 = tpu.matmul %116, %117, %cst_52 {dimension_numbers = #tpu.dot_dimension_numbers<[1], [0], [0], [1], [0, 0, 1, 1], [], []>} : vector<8x8xf32>, vector<8x16xf32>, vector<8x16xf32> -> vector<8x16xf32>
    %cst_53 = arith.constant dense<0xFF800000> : vector<8xf32>
    %119 = vector.multi_reduction <maximumf>, %118, %cst_53 [1] : vector<8x16xf32> to vector<8xf32>
    %120 = vector.shape_cast %119 : vector<8xf32> to vector<8x1xf32>
    %121 = vector.broadcast %120 : vector<8x1xf32> to vector<8x16xf32>
    %122 = arith.subf %118, %121 : vector<8x16xf32>
    %123 = math.exp %122 : vector<8x16xf32>
    %cst_54 = arith.constant dense<0.000000e+00> : vector<8xf32>
    %124 = vector.multi_reduction <add>, %123, %cst_54 [1] : vector<8x16xf32> to vector<8xf32>
    %125 = vector.shape_cast %124 : vector<8xf32> to vector<8x1xf32>
    %126 = tpu.reciprocal %125 : vector<8x1xf32> -> vector<8x1xf32>
    %127 = vector.broadcast %126 : vector<8x1xf32> to vector<8x16xf32>
    %128 = arith.mulf %123, %127 : vector<8x16xf32>
    %129 = vector.extract_strided_slice %114 {offsets = [0, 0], sizes = [16, 8], strides = [1, 1]} : vector<16x32xf32> to vector<16x8xf32>
    %cst_55 = arith.constant dense<0.000000e+00> : vector<8x8xf32>
    %130 = tpu.matmul %128, %129, %cst_55 {dimension_numbers = #tpu.dot_dimension_numbers<[1], [0], [0], [1], [0, 0, 1, 1], [], []>} : vector<8x16xf32>, vector<16x8xf32>, vector<8x8xf32> -> vector<8x8xf32>
    %c0_56 = arith.constant 0 : index
    %c0_57 = arith.constant 0 : index
    %131 = vector.load %arg20[%c0_56, %c0_57] : memref<8x32xf32, #tpu.memory_space<vmem>>, vector<8x8xf32>
    tpu.vector_store %arg20[%c0_56, %c0_57], %130 {strides = array<i32>} : memref<8x32xf32, #tpu.memory_space<vmem>>, vector<8x8xf32>,
    %132 = vector.extract_strided_slice %109 {offsets = [0, 8], sizes = [8, 8], strides = [1, 1]} : vector<8x32xf32> to vector<8x8xf32>
    %133 = vector.extract_strided_slice %115 {offsets = [8, 0], sizes = [8, 16], strides = [1, 1]} : vector<32x16xf32> to vector<8x16xf32>
    %cst_58 = arith.constant dense<0.000000e+00> : vector<8x16xf32>
    %134 = tpu.matmul %132, %133, %cst_58 {dimension_numbers = #tpu.dot_dimension_numbers<[1], [0], [0], [1], [0, 0, 1, 1], [], []>} : vector<8x8xf32>, vector<8x16xf32>, vector<8x16xf32> -> vector<8x16xf32>
    %cst_59 = arith.constant dense<0xFF800000> : vector<8xf32>
    %135 = vector.multi_reduction <maximumf>, %134, %cst_59 [1] : vector<8x16xf32> to vector<8xf32>
    %136 = vector.shape_cast %135 : vector<8xf32> to vector<8x1xf32>
    %137 = vector.broadcast %136 : vector<8x1xf32> to vector<8x16xf32>
    %138 = arith.subf %134, %137 : vector<8x16xf32>
    %139 = math.exp %138 : vector<8x16xf32>
    %cst_60 = arith.constant dense<0.000000e+00> : vector<8xf32>
    %140 = vector.multi_reduction <add>, %139, %cst_60 [1] : vector<8x16xf32> to vector<8xf32>
    %141 = vector.shape_cast %140 : vector<8xf32> to vector<8x1xf32>
    %142 = tpu.reciprocal %141 : vector<8x1xf32> -> vector<8x1xf32>
    %143 = vector.broadcast %142 : vector<8x1xf32> to vector<8x16xf32>
    %144 = arith.mulf %139, %143 : vector<8x16xf32>
    %145 = vector.extract_strided_slice %114 {offsets = [0, 8], sizes = [16, 8], strides = [1, 1]} : vector<16x32xf32> to vector<16x8xf32>
    %cst_61 = arith.constant dense<0.000000e+00> : vector<8x8xf32>
    %146 = tpu.matmul %144, %145, %cst_61 {dimension_numbers = #tpu.dot_dimension_numbers<[1], [0], [0], [1], [0, 0, 1, 1], [], []>} : vector<8x16xf32>, vector<16x8xf32>, vector<8x8xf32> -> vector<8x8xf32>
    %c0_62 = arith.constant 0 : index
    %c8_63 = arith.constant 8 : index
    %147 = vector.load %arg20[%c0_62, %c8_63] : memref<8x32xf32, #tpu.memory_space<vmem>>, vector<8x8xf32>
    tpu.vector_store %arg20[%c0_62, %c8_63], %146 {strides = array<i32>} : memref<8x32xf32, #tpu.memory_space<vmem>>, vector<8x8xf32>,
    %148 = vector.extract_strided_slice %109 {offsets = [0, 16], sizes = [8, 8], strides = [1, 1]} : vector<8x32xf32> to vector<8x8xf32>
    %149 = vector.extract_strided_slice %115 {offsets = [16, 0], sizes = [8, 16], strides = [1, 1]} : vector<32x16xf32> to vector<8x16xf32>
    %cst_64 = arith.constant dense<0.000000e+00> : vector<8x16xf32>
    %150 = tpu.matmul %148, %149, %cst_64 {dimension_numbers = #tpu.dot_dimension_numbers<[1], [0], [0], [1], [0, 0, 1, 1], [], []>} : vector<8x8xf32>, vector<8x16xf32>, vector<8x16xf32> -> vector<8x16xf32>
    %cst_65 = arith.constant dense<0xFF800000> : vector<8xf32>
    %151 = vector.multi_reduction <maximumf>, %150, %cst_65 [1] : vector<8x16xf32> to vector<8xf32>
    %152 = vector.shape_cast %151 : vector<8xf32> to vector<8x1xf32>
    %153 = vector.broadcast %152 : vector<8x1xf32> to vector<8x16xf32>
    %154 = arith.subf %150, %153 : vector<8x16xf32>
    %155 = math.exp %154 : vector<8x16xf32>
    %cst_66 = arith.constant dense<0.000000e+00> : vector<8xf32>
    %156 = vector.multi_reduction <add>, %155, %cst_66 [1] : vector<8x16xf32> to vector<8xf32>
    %157 = vector.shape_cast %156 : vector<8xf32> to vector<8x1xf32>
    %158 = tpu.reciprocal %157 : vector<8x1xf32> -> vector<8x1xf32>
    %159 = vector.broadcast %158 : vector<8x1xf32> to vector<8x16xf32>
    %160 = arith.mulf %155, %159 : vector<8x16xf32>
    %161 = vector.extract_strided_slice %114 {offsets = [0, 16], sizes = [16, 8], strides = [1, 1]} : vector<16x32xf32> to vector<16x8xf32>
    %cst_67 = arith.constant dense<0.000000e+00> : vector<8x8xf32>
    %162 = tpu.matmul %160, %161, %cst_67 {dimension_numbers = #tpu.dot_dimension_numbers<[1], [0], [0], [1], [0, 0, 1, 1], [], []>} : vector<8x16xf32>, vector<16x8xf32>, vector<8x8xf32> -> vector<8x8xf32>
    %c0_68 = arith.constant 0 : index
    %c16_69 = arith.constant 16 : index
    %163 = vector.load %arg20[%c0_68, %c16_69] : memref<8x32xf32, #tpu.memory_space<vmem>>, vector<8x8xf32>
    tpu.vector_store %arg20[%c0_68, %c16_69], %162 {strides = array<i32>} : memref<8x32xf32, #tpu.memory_space<vmem>>, vector<8x8xf32>,
    %164 = vector.extract_strided_slice %109 {offsets = [0, 24], sizes = [8, 8], strides = [1, 1]} : vector<8x32xf32> to vector<8x8xf32>
    %165 = vector.extract_strided_slice %115 {offsets = [24, 0], sizes = [8, 16], strides = [1, 1]} : vector<32x16xf32> to vector<8x16xf32>
    %cst_70 = arith.constant dense<0.000000e+00> : vector<8x16xf32>
    %166 = tpu.matmul %164, %165, %cst_70 {dimension_numbers = #tpu.dot_dimension_numbers<[1], [0], [0], [1], [0, 0, 1, 1], [], []>} : vector<8x8xf32>, vector<8x16xf32>, vector<8x16xf32> -> vector<8x16xf32>
    %cst_71 = arith.constant dense<0xFF800000> : vector<8xf32>
    %167 = vector.multi_reduction <maximumf>, %166, %cst_71 [1] : vector<8x16xf32> to vector<8xf32>
    %168 = vector.shape_cast %167 : vector<8xf32> to vector<8x1xf32>
    %169 = vector.broadcast %168 : vector<8x1xf32> to vector<8x16xf32>
    %170 = arith.subf %166, %169 : vector<8x16xf32>
    %171 = math.exp %170 : vector<8x16xf32>
    %cst_72 = arith.constant dense<0.000000e+00> : vector<8xf32>
    %172 = vector.multi_reduction <add>, %171, %cst_72 [1] : vector<8x16xf32> to vector<8xf32>
    %173 = vector.shape_cast %172 : vector<8xf32> to vector<8x1xf32>
    %174 = tpu.reciprocal %173 : vector<8x1xf32> -> vector<8x1xf32>
    %175 = vector.broadcast %174 : vector<8x1xf32> to vector<8x16xf32>
    %176 = arith.mulf %171, %175 : vector<8x16xf32>
    %177 = vector.extract_strided_slice %114 {offsets = [0, 24], sizes = [16, 8], strides = [1, 1]} : vector<16x32xf32> to vector<16x8xf32>
    %cst_73 = arith.constant dense<0.000000e+00> : vector<8x8xf32>
    %178 = tpu.matmul %176, %177, %cst_73 {dimension_numbers = #tpu.dot_dimension_numbers<[1], [0], [0], [1], [0, 0, 1, 1], [], []>} : vector<8x16xf32>, vector<16x8xf32>, vector<8x8xf32> -> vector<8x8xf32>
    %c0_74 = arith.constant 0 : index
    %c24_75 = arith.constant 24 : index
    %179 = vector.load %arg20[%c0_74, %c24_75] : memref<8x32xf32, #tpu.memory_space<vmem>>, vector<8x8xf32>
    tpu.vector_store %arg20[%c0_74, %c24_75], %178 {strides = array<i32>} : memref<8x32xf32, #tpu.memory_space<vmem>>, vector<8x8xf32>,
    %c0_76 = arith.constant 0 : index
    %c0_77 = arith.constant 0 : index
    %180 = vector.load %arg20[%c0_76, %c0_77] : memref<8x32xf32, #tpu.memory_space<vmem>>, vector<8x32xf32>
    %c0_78 = arith.constant 0 : index
    %c0_79 = arith.constant 0 : index
    %181 = vector.load %arg8[%c0_78, %c0_79] : memref<32x32xf32, #tpu.memory_space<vmem>>, vector<32x32xf32>
    %cst_80 = arith.constant dense<0.000000e+00> : vector<8x32xf32>
    %182 = tpu.matmul %180, %181, %cst_80 {dimension_numbers = #tpu.dot_dimension_numbers<[1], [0], [0], [1], [0, 0, 1, 1], [], []>} : vector<8x32xf32>, vector<32x32xf32>, vector<8x32xf32> -> vector<8x32xf32>
    %183 = tpu.concatenate %182, %182 in 0 : vector<8x32xf32>, vector<8x32xf32> -> vector<16x32xf32>
    %184 = arith.addf %183, %102 : vector<16x32xf32>
    %cst_81 = arith.constant dense<0.000000e+00> : vector<16xf32>
    %185 = vector.multi_reduction <add>, %184, %cst_81 [1] : vector<16x32xf32> to vector<16xf32>
    %186 = vector.shape_cast %185 : vector<16xf32> to vector<16x1xf32>
    %cst_82 = arith.constant 3.200000e+01 : f32
    %187 = vector.broadcast %cst_82 : f32 to vector<16x1xf32>
    %188 = arith.divf %186, %187 : vector<16x1xf32>
    %189 = vector.broadcast %188 : vector<16x1xf32> to vector<16x32xf32>
    %190 = arith.subf %184, %189 : vector<16x32xf32>
    %191 = arith.mulf %190, %190 : vector<16x32xf32>
    %cst_83 = arith.constant dense<0.000000e+00> : vector<16xf32>
    %192 = vector.multi_reduction <add>, %191, %cst_83 [1] : vector<16x32xf32> to vector<16xf32>
    %193 = vector.shape_cast %192 : vector<16xf32> to vector<16x1xf32>
    %cst_84 = arith.constant 3.200000e+01 : f32
    %194 = vector.broadcast %cst_84 : f32 to vector<16x1xf32>
    %195 = arith.divf %193, %194 : vector<16x1xf32>
    %196 = vector.broadcast %188 : vector<16x1xf32> to vector<16x32xf32>
    %197 = arith.subf %184, %196 : vector<16x32xf32>
    %cst_85 = arith.constant 9.99999974E-6 : f32
    %198 = vector.broadcast %cst_85 : f32 to vector<16x1xf32>
    %199 = arith.addf %195, %198 : vector<16x1xf32>
    %200 = math.rsqrt %199 : vector<16x1xf32>
    %201 = vector.broadcast %200 : vector<16x1xf32> to vector<16x32xf32>
    %202 = arith.mulf %197, %201 : vector<16x32xf32>
    %c0_86 = arith.constant 0 : index
    %c0_87 = arith.constant 0 : index
    %203 = vector.load %arg11[%c0_86, %c0_87] : memref<1x32xf32, #tpu.memory_space<vmem>>, vector<1x32xf32>
    %204 = vector.broadcast %203 : vector<1x32xf32> to vector<16x32xf32>
    %205 = arith.mulf %202, %204 : vector<16x32xf32>
    %c0_88 = arith.constant 0 : index
    %c0_89 = arith.constant 0 : index
    %206 = vector.load %arg12[%c0_88, %c0_89] : memref<1x32xf32, #tpu.memory_space<vmem>>, vector<1x32xf32>
    %207 = vector.broadcast %206 : vector<1x32xf32> to vector<16x32xf32>
    %208 = arith.addf %205, %207 : vector<16x32xf32>
    %c0_90 = arith.constant 0 : index
    %c0_91 = arith.constant 0 : index
    %209 = vector.load %arg15[%c0_90, %c0_91] : memref<32x64xf32, #tpu.memory_space<vmem>>, vector<32x64xf32>
    %cst_92 = arith.constant dense<0.000000e+00> : vector<16x64xf32>
    %210 = tpu.matmul %208, %209, %cst_92 {dimension_numbers = #tpu.dot_dimension_numbers<[1], [0], [0], [1], [0, 0, 1, 1], [], []>} : vector<16x32xf32>, vector<32x64xf32>, vector<16x64xf32> -> vector<16x64xf32>
    %c0_93 = arith.constant 0 : index
    %c0_94 = arith.constant 0 : index
    %211 = vector.load %arg16[%c0_93, %c0_94] : memref<1x64xf32, #tpu.memory_space<vmem>>, vector<1x64xf32>
    %212 = vector.broadcast %211 : vector<1x64xf32> to vector<16x64xf32>
    %213 = arith.addf %210, %212 : vector<16x64xf32>
    %cst_95 = arith.constant 0.000000e+00 : f32
    %214 = vector.broadcast %cst_95 : f32 to vector<16x64xf32>
    %215 = arith.maximumf %213, %214 : vector<16x64xf32>
    %c0_96 = arith.constant 0 : index
    %c0_97 = arith.constant 0 : index
    %216 = vector.load %arg17[%c0_96, %c0_97] : memref<64x32xf32, #tpu.memory_space<vmem>>, vector<64x32xf32>
    %cst_98 = arith.constant dense<0.000000e+00> : vector<16x32xf32>
    %217 = tpu.matmul %215, %216, %cst_98 {dimension_numbers = #tpu.dot_dimension_numbers<[1], [0], [0], [1], [0, 0, 1, 1], [], []>} : vector<16x64xf32>, vector<64x32xf32>, vector<16x32xf32> -> vector<16x32xf32>
    %c0_99 = arith.constant 0 : index
    %c0_100 = arith.constant 0 : index
    %218 = vector.load %arg18[%c0_99, %c0_100] : memref<1x32xf32, #tpu.memory_space<vmem>>, vector<1x32xf32>
    %219 = vector.broadcast %218 : vector<1x32xf32> to vector<16x32xf32>
    %220 = arith.addf %217, %219 : vector<16x32xf32>
    %221 = arith.addf %220, %208 : vector<16x32xf32>
    %cst_101 = arith.constant dense<0.000000e+00> : vector<16xf32>
    %222 = vector.multi_reduction <add>, %221, %cst_101 [1] : vector<16x32xf32> to vector<16xf32>
    %223 = vector.shape_cast %222 : vector<16xf32> to vector<16x1xf32>
    %cst_102 = arith.constant 3.200000e+01 : f32
    %224 = vector.broadcast %cst_102 : f32 to vector<16x1xf32>
    %225 = arith.divf %223, %224 : vector<16x1xf32>
    %226 = vector.broadcast %225 : vector<16x1xf32> to vector<16x32xf32>
    %227 = arith.subf %221, %226 : vector<16x32xf32>
    %228 = arith.mulf %227, %227 : vector<16x32xf32>
    %cst_103 = arith.constant dense<0.000000e+00> : vector<16xf32>
    %229 = vector.multi_reduction <add>, %228, %cst_103 [1] : vector<16x32xf32> to vector<16xf32>
    %230 = vector.shape_cast %229 : vector<16xf32> to vector<16x1xf32>
    %cst_104 = arith.constant 3.200000e+01 : f32
    %231 = vector.broadcast %cst_104 : f32 to vector<16x1xf32>
    %232 = arith.divf %230, %231 : vector<16x1xf32>
    %233 = vector.broadcast %225 : vector<16x1xf32> to vector<16x32xf32>
    %234 = arith.subf %221, %233 : vector<16x32xf32>
    %cst_105 = arith.constant 9.99999974E-6 : f32
    %235 = vector.broadcast %cst_105 : f32 to vector<16x1xf32>
    %236 = arith.addf %232, %235 : vector<16x1xf32>
    %237 = math.rsqrt %236 : vector<16x1xf32>
    %238 = vector.broadcast %237 : vector<16x1xf32> to vector<16x32xf32>
    %239 = arith.mulf %234, %238 : vector<16x32xf32>
    %c0_106 = arith.constant 0 : index
    %c0_107 = arith.constant 0 : index
    %240 = vector.load %arg13[%c0_106, %c0_107] : memref<1x32xf32, #tpu.memory_space<vmem>>, vector<1x32xf32>
    %241 = vector.broadcast %240 : vector<1x32xf32> to vector<16x32xf32>
    %242 = arith.mulf %239, %241 : vector<16x32xf32>
    %c0_108 = arith.constant 0 : index
    %c0_109 = arith.constant 0 : index
    %243 = vector.load %arg14[%c0_108, %c0_109] : memref<1x32xf32, #tpu.memory_space<vmem>>, vector<1x32xf32>
    %244 = vector.broadcast %243 : vector<1x32xf32> to vector<16x32xf32>
    %245 = arith.addf %242, %244 : vector<16x32xf32>
    %c0_110 = arith.constant 0 : index
    %c0_111 = arith.constant 0 : index
    %246 = vector.load %arg19[%c0_110, %c0_111] : memref<16x32xf32, #tpu.memory_space<vmem>>, vector<16x32xf32>
    tpu.vector_store %arg19[%c0_110, %c0_111], %245 {strides = array<i32>} : memref<16x32xf32, #tpu.memory_space<vmem>>, vector<16x32xf32>,
    return
  }
}

</mosaic_0001>

<llo_original>
// kernel: decoder_layer.1
$region0: #{decoder_layer.1}
  #allocation0 [shape = 'u32[]', space=smem, size = 0x4, offset = 0x4, fixed_abs, tag = 'smem constant byte address 0x4 - core index']
  #allocation1 [shape = 'u32[144,128]{1,0:T(1,128)}', space=vmem, size = 0x12000, scoped, tag = 'internal scratch']
  #allocation2 [shape = 'f32[8,32]{1,0:T(8,128)}', space=vmem, size = 0x1000, scoped, tag = 'scratch operand']
  %s0 = inlined_call_operand.vmem [shape: f32[16,32], index: 0, kind: input, shape index: {}]
  %s1 = inlined_call_operand.vmem [shape: f32[16,32], index: 1, kind: input, shape index: {}]
  %s2 = inlined_call_operand.vmem [shape: f32[8,32], index: 2, kind: input, shape index: {}]
  %s3 = inlined_call_operand.vmem [shape: f32[32,32], index: 3, kind: input, shape index: {}]
  %s4 = inlined_call_operand.vmem [shape: f32[32,96], index: 4, kind: input, shape index: {}]
  %s5 = inlined_call_operand.vmem [shape: f32[32,32], index: 5, kind: input, shape index: {}]
  %s6 = inlined_call_operand.vmem [shape: f32[32,32], index: 6, kind: input, shape index: {}]
  %s7 = inlined_call_operand.vmem [shape: f32[32,64], index: 7, kind: input, shape index: {}]
  %s8 = inlined_call_operand.vmem [shape: f32[32,32], index: 8, kind: input, shape index: {}]
  %s9 = inlined_call_operand.vmem [shape: f32[1,32], index: 9, kind: input, shape index: {}]
  %s10 = inlined_call_operand.vmem [shape: f32[1,32], index: 10, kind: input, shape index: {}]
  %s11 = inlined_call_operand.vmem [shape: f32[1,32], index: 11, kind: input, shape index: {}]
  %s12 = inlined_call_operand.vmem [shape: f32[1,32], index: 12, kind: input, shape index: {}]
  %s13 = inlined_call_operand.vmem [shape: f32[1,32], index: 13, kind: input, shape index: {}]
  %s14 = inlined_call_operand.vmem [shape: f32[1,32], index: 14, kind: input, shape index: {}]
  %s15 = inlined_call_operand.vmem [shape: f32[32,64], index: 15, kind: input, shape index: {}]
  %s16 = inlined_call_operand.vmem [shape: f32[1,64], index: 16, kind: input, shape index: {}]
  %s17 = inlined_call_operand.vmem [shape: f32[64,32], index: 17, kind: input, shape index: {}]
  %s18 = inlined_call_operand.vmem [shape: f32[1,32], index: 18, kind: input, shape index: {}]
  %s19 = inlined_call_operand.hbm [shape: f32[16,32], index: 19, kind: output, shape index: {}]
  %s20 = sld [smem:[#allocation0]]
  $region86: #{decoder_layer.1} parent=0
    _
  %s22 = ssub.s32 1, %s20
  %s23 = scalar_select 0, %s22, %s20
  $region1: #{decoder_layer.1} parent=0
    #allocation3 [shape = 'u8[8192]{0}', space=vmem, size = 0x2000, scoped, tag = 'output window, operand 0, single buffered']
    #allocation4 [shape = 's32[1]{0}', space=sflag, size = 0x4, scoped, tag = 'scoped memory for decoder_layer.1']
    %24 = vsyncpa [#allocation4], 0
    // Predicated region
    $region2: #{decoder_layer.1} parent=1 // pred_check
      _
    $region3: #{decoder_layer.1} parent=1 // pred_check_branch
      %26 = sbr.rel (0) target = $region5
    $region4: #{decoder_layer.1} parent=1 // pred_region
      _
    $region5: #{decoder_layer.1} parent=1 // pred_fallthru
      _
    // Predicated region
    $region6: #{decoder_layer.1} parent=1 // pred_check
      _
    $region7: #{decoder_layer.1} parent=1 // pred_check_branch
      %28 = sbr.rel (0) target = $region9
    $region8: #{decoder_layer.1} parent=1 // pred_region
      _
    $region9: #{decoder_layer.1} parent=1 // pred_fallthru
      _
    // Predicated region
    $region10: #{decoder_layer.1} parent=1 // pred_check
      _
    $region11: #{decoder_layer.1} parent=1 // pred_check_branch
      %30 = sbr.rel (0) target = $region13
    $region12: #{decoder_layer.1} parent=1 // pred_region
      _
    $region13: #{decoder_layer.1} parent=1 // pred_fallthru
      _
    // Predicated region
    $region14: #{decoder_layer.1} parent=1 // pred_check
      _
    $region15: #{decoder_layer.1} parent=1 // pred_check_branch
      %32 = sbr.rel (0) target = $region17
    $region16: #{decoder_layer.1} parent=1 // pred_region
      _
    $region17: #{decoder_layer.1} parent=1 // pred_fallthru
      _
    // Predicated region
    $region18: #{decoder_layer.1} parent=1 // pred_check
      _
    $region19: #{decoder_layer.1} parent=1 // pred_check_branch
      %34 = sbr.rel (0) target = $region21
    $region20: #{decoder_layer.1} parent=1 // pred_region
      _
    $region21: #{decoder_layer.1} parent=1 // pred_fallthru
      _
    // Predicated region
    $region22: #{decoder_layer.1} parent=1 // pred_check
      _
    $region23: #{decoder_layer.1} parent=1 // pred_check_branch
      %36 = sbr.rel (0) target = $region25
    $region24: #{decoder_layer.1} parent=1 // pred_region
      _
    $region25: #{decoder_layer.1} parent=1 // pred_fallthru
      _
    // Predicated region
    $region26: #{decoder_layer.1} parent=1 // pred_check
      _
    $region27: #{decoder_layer.1} parent=1 // pred_check_branch
      %38 = sbr.rel (0) target = $region29
    $region28: #{decoder_layer.1} parent=1 // pred_region
      _
    $region29: #{decoder_layer.1} parent=1 // pred_fallthru
      _
    // Predicated region
    $region30: #{decoder_layer.1} parent=1 // pred_check
      _
    $region31: #{decoder_layer.1} parent=1 // pred_check_branch
      %40 = sbr.rel (0) target = $region33
    $region32: #{decoder_layer.1} parent=1 // pred_region
      _
    $region33: #{decoder_layer.1} parent=1 // pred_fallthru
      _
    // Predicated region
    $region34: #{decoder_layer.1} parent=1 // pred_check
      _
    $region35: #{decoder_layer.1} parent=1 // pred_check_branch
      %42 = sbr.rel (0) target = $region37
    $region36: #{decoder_layer.1} parent=1 // pred_region
      _
    $region37: #{decoder_layer.1} parent=1 // pred_fallthru
      _
    // Predicated region
    $region38: #{decoder_layer.1} parent=1 // pred_check
      _
    $region39: #{decoder_layer.1} parent=1 // pred_check_branch
      %44 = sbr.rel (0) target = $region41
    $region40: #{decoder_layer.1} parent=1 // pred_region
      _
    $region41: #{decoder_layer.1} parent=1 // pred_fallthru
      _
    // Predicated region
    $region42: #{decoder_layer.1} parent=1 // pred_check
      _
    $region43: #{decoder_layer.1} parent=1 // pred_check_branch
      %46 = sbr.rel (0) target = $region45
    $region44: #{decoder_layer.1} parent=1 // pred_region
      _
    $region45: #{decoder_layer.1} parent=1 // pred_fallthru
      _
    // Predicated region
    $region46: #{decoder_layer.1} parent=1 // pred_check
      _
    $region47: #{decoder_layer.1} parent=1 // pred_check_branch
      %48 = sbr.rel (0) target = $region49
    $region48: #{decoder_layer.1} parent=1 // pred_region
      _
    $region49: #{decoder_layer.1} parent=1 // pred_fallthru
      _
    // Predicated region
    $region50: #{decoder_layer.1} parent=1 // pred_check
      _
    $region51: #{decoder_layer.1} parent=1 // pred_check_branch
      %50 = sbr.rel (0) target = $region53
    $region52: #{decoder_layer.1} parent=1 // pred_region
      _
    $region53: #{decoder_layer.1} parent=1 // pred_fallthru
      _
    // Predicated region
    $region54: #{decoder_layer.1} parent=1 // pred_check
      _
    $region55: #{decoder_layer.1} parent=1 // pred_check_branch
      %52 = sbr.rel (0) target = $region57
    $region56: #{decoder_layer.1} parent=1 // pred_region
      _
    $region57: #{decoder_layer.1} parent=1 // pred_fallthru
      _
    // Predicated region
    $region58: #{decoder_layer.1} parent=1 // pred_check
      _
    $region59: #{decoder_layer.1} parent=1 // pred_check_branch
      %54 = sbr.rel (0) target = $region61
    $region60: #{decoder_layer.1} parent=1 // pred_region
      _
    $region61: #{decoder_layer.1} parent=1 // pred_fallthru
      _
    // Predicated region
    $region62: #{decoder_layer.1} parent=1 // pred_check
      _
    $region63: #{decoder_layer.1} parent=1 // pred_check_branch
      %56 = sbr.rel (0) target = $region65
    $region64: #{decoder_layer.1} parent=1 // pred_region
      _
    $region65: #{decoder_layer.1} parent=1 // pred_fallthru
      _
    // Predicated region
    $region66: #{decoder_layer.1} parent=1 // pred_check
      _
    $region67: #{decoder_layer.1} parent=1 // pred_check_branch
      %58 = sbr.rel (0) target = $region69
    $region68: #{decoder_layer.1} parent=1 // pred_region
      _
    $region69: #{decoder_layer.1} parent=1 // pred_fallthru
      _
    // Predicated region
    $region70: #{decoder_layer.1} parent=1 // pred_check
      _
    $region71: #{decoder_layer.1} parent=1 // pred_check_branch
      %60 = sbr.rel (0) target = $region73
    $region72: #{decoder_layer.1} parent=1 // pred_region
      _
    $region73: #{decoder_layer.1} parent=1 // pred_fallthru
      _
    // Predicated region
    $region74: #{decoder_layer.1} parent=1 // pred_check
      _
    $region75: #{decoder_layer.1} parent=1 // pred_check_branch
      %62 = sbr.rel (0) target = $region77
    $region76: #{decoder_layer.1} parent=1 // pred_region
      _
    $region77: #{decoder_layer.1} parent=1 // pred_fallthru
      _
    %v63 = vld [vmem:[%s1] sm:$0xff]
    %v64 = vld [vmem:[%s1 + $0x8] sm:$0xff]
    %v65 = vld [vmem:[%s4] sm:$0xff]
    %v66 = vld [vmem:[%s4 + $0x8] sm:$0xff]
    %v67 = vld [vmem:[%s4 + $0x10] sm:$0xff]
    %v68 = vld [vmem:[%s4 + $0x18] sm:$0xff]
    %vm69 = vcmask 261120
    %v71 = vsel %vm69, %v63, 0
    %v74 = vsel %vm69, %v64, 0
    %76 = vmatprep.subr.mxu0 0.0
    %77 = vmatpush1.msra.mxu0 0.0
    %78 = vmatprep.subr.mxu0 0.0
    %79 = vmatpush1.msra.mxu0 0.0
    %80 = vmatprep.subr.mxu0 0.0
    %81 = vmatpush1.msra.mxu0 0.0
    %82 = vmatprep.subr.mxu0 0.0
    %83 = vmatpush1.msra.mxu0 0.0
    %84 = vmatprep.subr.mxu0 0.0
    %85 = vmatpush1.msra.mxu0 0.0
    %86 = vmatprep.subr.mxu0 0.0
    %87 = vmatpush1.msra.mxu0 0.0
    %88 = vmatprep.subr.mxu0 0.0
    %89 = vmatpush1.msra.mxu0 0.0
    %90 = vmatprep.subr.mxu0 0.0
    %91 = vmatpush1.msra.mxu0 0.0
    %92 = vmatprep.subr.mxu0 0.0
    %93 = vmatpush1.msra.mxu0 0.0
    %94 = vmatprep.subr.mxu0 0.0
    %95 = vmatpush1.msra.mxu0 0.0
    %96 = vmatprep.subr.mxu0 0.0
    %97 = vmatpush1.msra.mxu0 0.0
    %98 = vmatprep.subr.mxu0 0.0
    %99 = vmatpush1.msra.mxu0 0.0
    %100 = vmatprep.subr.mxu0 0.0
    %101 = vmatpush1.msra.mxu0 %v68
    %102 = vmatprep.subr.mxu0 0.0
    %103 = vmatpush1.msra.mxu0 %v67
    %104 = vmatprep.subr.mxu0 0.0
    %105 = vmatpush1.msra.mxu0 %v66
    %106 = vmatprep.subr.mxu0 0.0
    %107 = vmatpush1.msra.mxu0 %v65
    %108 = vmatprep.subr.mxu0 0.0
    %109 = vmatpush2.msra.mxu0 0.0
    %110 = vmatprep.subr.mxu0 0.0
    %111 = vmatpush2.msra.mxu0 0.0
    %112 = vmatprep.subr.mxu0 0.0
    %113 = vmatpush2.msra.mxu0 0.0
    %114 = vmatprep.subr.mxu0 0.0
    %115 = vmatpush2.msra.mxu0 0.0
    %116 = vmatprep.subr.mxu0 0.0
    %117 = vmatpush2.msra.mxu0 0.0
    %118 = vmatprep.subr.mxu0 0.0
    %119 = vmatpush2.msra.mxu0 0.0
    %120 = vmatprep.subr.mxu0 0.0
    %121 = vmatpush2.msra.mxu0 0.0
    %122 = vmatprep.subr.mxu0 0.0
    %123 = vmatpush2.msra.mxu0 0.0
    %124 = vmatprep.subr.mxu0 0.0
    %125 = vmatpush2.msra.mxu0 0.0
    %126 = vmatprep.subr.mxu0 0.0
    %127 = vmatpush2.msra.mxu0 0.0
    %128 = vmatprep.subr.mxu0 0.0
    %129 = vmatpush2.msra.mxu0 0.0
    %130 = vmatprep.subr.mxu0 0.0
    %131 = vmatpush2.msra.mxu0 0.0
    %132 = vmatprep.subr.mxu0 0.0
    %133 = vmatpush2.msra.mxu0 0.0
    %134 = vmatprep.subr.mxu0 0.0
    %135 = vmatpush2.msra.mxu0 0.0
    %136 = vmatprep.subr.mxu0 0.0
    %137 = vmatpush2.msra.mxu0 0.0
    %138 = vmatprep.subr.mxu0 0.0
    %139 = vmatpush2.msra.mxu0 0.0
    %140 = vmatprep.mubr.f32.mxu0 0.0
    %141 = vmatmul.mubr.f32.gmra.mxu0 %v71
    %v142 = vpop.f32.mrf.mxu0
    %v143 = vadd.f32 0.0, %v142
    %v144 = vpop.f32.mrf.mxu0
    %145 = vmatprep.mubr.f32.mxu0 0.0
    %146 = vmatmul.mubr.f32.gmra.mxu0 %v74
    %v147 = vpop.f32.mrf.mxu0
    %v148 = vadd.f32 0.0, %v147
    %v149 = vpop.f32.mrf.mxu0
    %150 = vdwg.mxu0
    %v151 = vmul.f32 %v143, 0.35355338
    %153 = vrot.lane.b32.xlu0 %v143, 96
    %v154 = vpop.permute.xlu0 %153
    %vm155 = vcmask 64512
    %v157 = vsel %vm155, %v151, 0
    %v159 = vsel %vm155, %v154, 0
    %161 = vmatprep.subr.mxu0 0.0
    %162 = vmatpush1.xpose.msra.mxu0 0.0
    %163 = vmatprep.subr.mxu0 0.0
    %164 = vmatpush1.xpose.msra.mxu0 0.0
    %165 = vmatprep.subr.mxu0 0.0
    %166 = vmatpush1.xpose.msra.mxu0 0.0
    %167 = vmatprep.subr.mxu0 0.0
    %168 = vmatpush1.xpose.msra.mxu0 0.0
    %169 = vmatprep.subr.mxu0 0.0
    %170 = vmatpush1.xpose.msra.mxu0 0.0
    %171 = vmatprep.subr.mxu0 0.0
    %172 = vmatpush1.xpose.msra.mxu0 0.0
    %173 = vmatprep.subr.mxu0 0.0
    %174 = vmatpush1.xpose.msra.mxu0 0.0
    %175 = vmatprep.subr.mxu0 0.0
    %176 = vmatpush1.xpose.msra.mxu0 0.0
    %177 = vmatprep.subr.mxu0 0.0
    %178 = vmatpush1.xpose.msra.mxu0 0.0
    %179 = vmatprep.subr.mxu0 0.0
    %180 = vmatpush1.xpose.msra.mxu0 0.0
    %181 = vmatprep.subr.mxu0 0.0
    %182 = vmatpush1.xpose.msra.mxu0 0.0
    %183 = vmatprep.subr.mxu0 0.0
    %184 = vmatpush1.xpose.msra.mxu0 0.0
    %185 = vmatprep.subr.mxu0 0.0
    %186 = vmatpush1.xpose.msra.mxu0 0.0
    %187 = vmatprep.subr.mxu0 0.0
    %188 = vmatpush1.xpose.msra.mxu0 0.0
    %189 = vmatprep.subr.mxu0 0.0
    %190 = vmatpush1.xpose.msra.mxu0 0.0
    %191 = vmatprep.subr.mxu0 0.0
    %192 = vmatpush1.xpose.msra.mxu0 %v159
    %193 = vmatprep.subr.mxu0 0.0
    %194 = vmatpush2.xpose.msra.mxu0 0.0
    %195 = vmatprep.subr.mxu0 0.0
    %196 = vmatpush2.xpose.msra.mxu0 0.0
    %197 = vmatprep.subr.mxu0 0.0
    %198 = vmatpush2.xpose.msra.mxu0 0.0
    %199 = vmatprep.subr.mxu0 0.0
    %200 = vmatpush2.xpose.msra.mxu0 0.0
    %201 = vmatprep.subr.mxu0 0.0
    %202 = vmatpush2.xpose.msra.mxu0 0.0
    %203 = vmatprep.subr.mxu0 0.0
    %204 = vmatpush2.xpose.msra.mxu0 0.0
    %205 = vmatprep.subr.mxu0 0.0
    %206 = vmatpush2.xpose.msra.mxu0 0.0
    %207 = vmatprep.subr.mxu0 0.0
    %208 = vmatpush2.xpose.msra.mxu0 0.0
    %209 = vmatprep.subr.mxu0 0.0
    %210 = vmatpush2.xpose.msra.mxu0 0.0
    %211 = vmatprep.subr.mxu0 0.0
    %212 = vmatpush2.xpose.msra.mxu0 0.0
    %213 = vmatprep.subr.mxu0 0.0
    %214 = vmatpush2.xpose.msra.mxu0 0.0
    %215 = vmatprep.subr.mxu0 0.0
    %216 = vmatpush2.xpose.msra.mxu0 0.0
    %217 = vmatprep.subr.mxu0 0.0
    %218 = vmatpush2.xpose.msra.mxu0 0.0
    %219 = vmatprep.subr.mxu0 0.0
    %220 = vmatpush2.xpose.msra.mxu0 0.0
    %221 = vmatprep.subr.mxu0 0.0
    %222 = vmatpush2.xpose.msra.mxu0 0.0
    %223 = vmatprep.subr.mxu0 0.0
    %224 = vmatpush2.xpose.msra.mxu0 0.0
    %225 = vmatprep.mubr.f32.mxu0 0.0
    %226 = vmatmul.mubr.f32.gmra.mxu0 %v157
    %v227 = vpop.f32.mrf.mxu0
    %v228 = vadd.f32 0.0, %v227
    %v229 = vpop.f32.mrf.mxu0
    %230 = vdwg.mxu0
    %v231 = vsel %vm155, %v228, -inf
    %232 = vmax.xlane.f32.xlu0 %v231
    %v233 = vpop.xlane.xlu0 %232
    %v234 = vsub.f32 %v228, %v233
    %v235 = vmul.f32 %v234, 1.442695
    %v236 = vpow.pop %v235
    %v237 = vsel %vm155, %v236, 0.0
    %238 = vadd.xlane.f32.xlu0 %v237
    %v239 = vpop.xlane.xlu0 %238
    %v240 = vrcp.pop %v239
    %v241 = vmul.f32 %v236, %v240
    %243 = vrot.lane.b32.xlu0 %v148, 64
    %v244 = vpop.permute.xlu0 %243
    %v247 = vsel %vm155, %v241, 0
    %249 = vmatprep.subr.mxu0 0.0
    %250 = vmatpush1.msra.mxu0 0.0
    %251 = vmatprep.subr.mxu0 0.0
    %252 = vmatpush1.msra.mxu0 0.0
    %253 = vmatprep.subr.mxu0 0.0
    %254 = vmatpush1.msra.mxu0 0.0
    %255 = vmatprep.subr.mxu0 0.0
    %256 = vmatpush1.msra.mxu0 0.0
    %257 = vmatprep.subr.mxu0 0.0
    %258 = vmatpush1.msra.mxu0 0.0
    %259 = vmatprep.subr.mxu0 0.0
    %260 = vmatpush1.msra.mxu0 0.0
    %261 = vmatprep.subr.mxu0 0.0
    %262 = vmatpush1.msra.mxu0 0.0
    %263 = vmatprep.subr.mxu0 0.0
    %264 = vmatpush1.msra.mxu0 0.0
    %265 = vmatprep.subr.mxu0 0.0
    %266 = vmatpush1.msra.mxu0 0.0
    %267 = vmatprep.subr.mxu0 0.0
    %268 = vmatpush1.msra.mxu0 0.0
    %269 = vmatprep.subr.mxu0 0.0
    %270 = vmatpush1.msra.mxu0 0.0
    %271 = vmatprep.subr.mxu0 0.0
    %272 = vmatpush1.msra.mxu0 0.0
    %273 = vmatprep.subr.mxu0 0.0
    %274 = vmatpush1.msra.mxu0 0.0
    %275 = vmatprep.subr.mxu0 0.0
    %276 = vmatpush1.msra.mxu0 0.0
    %277 = vmatprep.subr.mxu0 0.0
    %278 = vmatpush1.msra.mxu0 0.0
    %279 = vmatprep.subr.mxu0 0.0
    %280 = vmatpush1.msra.mxu0 %v244
    %281 = vmatprep.subr.mxu0 0.0
    %282 = vmatpush2.msra.mxu0 0.0
    %283 = vmatprep.subr.mxu0 0.0
    %284 = vmatpush2.msra.mxu0 0.0
    %285 = vmatprep.subr.mxu0 0.0
    %286 = vmatpush2.msra.mxu0 0.0
    %287 = vmatprep.subr.mxu0 0.0
    %288 = vmatpush2.msra.mxu0 0.0
    %289 = vmatprep.subr.mxu0 0.0
    %290 = vmatpush2.msra.mxu0 0.0
    %291 = vmatprep.subr.mxu0 0.0
    %292 = vmatpush2.msra.mxu0 0.0
    %293 = vmatprep.subr.mxu0 0.0
    %294 = vmatpush2.msra.mxu0 0.0
    %295 = vmatprep.subr.mxu0 0.0
    %296 = vmatpush2.msra.mxu0 0.0
    %297 = vmatprep.subr.mxu0 0.0
    %298 = vmatpush2.msra.mxu0 0.0
    %299 = vmatprep.subr.mxu0 0.0
    %300 = vmatpush2.msra.mxu0 0.0
    %301 = vmatprep.subr.mxu0 0.0
    %302 = vmatpush2.msra.mxu0 0.0
    %303 = vmatprep.subr.mxu0 0.0
    %304 = vmatpush2.msra.mxu0 0.0
    %305 = vmatprep.subr.mxu0 0.0
    %306 = vmatpush2.msra.mxu0 0.0
    %307 = vmatprep.subr.mxu0 0.0
    %308 = vmatpush2.msra.mxu0 0.0
    %309 = vmatprep.subr.mxu0 0.0
    %310 = vmatpush2.msra.mxu0 0.0
    %311 = vmatprep.subr.mxu0 0.0
    %312 = vmatpush2.msra.mxu0 0.0
    %313 = vmatprep.mubr.f32.mxu0 0.0
    %314 = vmatmul.mubr.f32.gmra.mxu0 %v247
    %v315 = vpop.f32.mrf.mxu0
    %v316 = vadd.f32 0.0, %v315
    %v317 = vpop.f32.mrf.mxu0
    %318 = vdwg.mxu0
    %319 = vst.msk [vmem:[#allocation2] sm:$0xff] %vm155, %v316
    %320 = vrot.lane.b32.xlu0 %v151, 120
    %v321 = vpop.permute.xlu0 %320
    %322 = vrot.lane.b32.xlu0 %v143, 88
    %v323 = vpop.permute.xlu0 %322
    %v324 = vsel %vm155, %v321, 0
    %v326 = vsel %vm155, %v323, 0
    %328 = vmatprep.subr.mxu0 0.0
    %329 = vmatpush1.xpose.msra.mxu0 0.0
    %330 = vmatprep.subr.mxu0 0.0
    %331 = vmatpush1.xpose.msra.mxu0 0.0
    %332 = vmatprep.subr.mxu0 0.0
    %333 = vmatpush1.xpose.msra.mxu0 0.0
    %334 = vmatprep.subr.mxu0 0.0
    %335 = vmatpush1.xpose.msra.mxu0 0.0
    %336 = vmatprep.subr.mxu0 0.0
    %337 = vmatpush1.xpose.msra.mxu0 0.0
    %338 = vmatprep.subr.mxu0 0.0
    %339 = vmatpush1.xpose.msra.mxu0 0.0
    %340 = vmatprep.subr.mxu0 0.0
    %341 = vmatpush1.xpose.msra.mxu0 0.0
    %342 = vmatprep.subr.mxu0 0.0
    %343 = vmatpush1.xpose.msra.mxu0 0.0
    %344 = vmatprep.subr.mxu0 0.0
    %345 = vmatpush1.xpose.msra.mxu0 0.0
    %346 = vmatprep.subr.mxu0 0.0
    %347 = vmatpush1.xpose.msra.mxu0 0.0
    %348 = vmatprep.subr.mxu0 0.0
    %349 = vmatpush1.xpose.msra.mxu0 0.0
    %350 = vmatprep.subr.mxu0 0.0
    %351 = vmatpush1.xpose.msra.mxu0 0.0
    %352 = vmatprep.subr.mxu0 0.0
    %353 = vmatpush1.xpose.msra.mxu0 0.0
    %354 = vmatprep.subr.mxu0 0.0
    %355 = vmatpush1.xpose.msra.mxu0 0.0
    %356 = vmatprep.subr.mxu0 0.0
    %357 = vmatpush1.xpose.msra.mxu0 0.0
    %358 = vmatprep.subr.mxu0 0.0
    %359 = vmatpush1.xpose.msra.mxu0 %v326
    %360 = vmatprep.subr.mxu0 0.0
    %361 = vmatpush2.xpose.msra.mxu0 0.0
    %362 = vmatprep.subr.mxu0 0.0
    %363 = vmatpush2.xpose.msra.mxu0 0.0
    %364 = vmatprep.subr.mxu0 0.0
    %365 = vmatpush2.xpose.msra.mxu0 0.0
    %366 = vmatprep.subr.mxu0 0.0
    %367 = vmatpush2.xpose.msra.mxu0 0.0
    %368 = vmatprep.subr.mxu0 0.0
    %369 = vmatpush2.xpose.msra.mxu0 0.0
    %370 = vmatprep.subr.mxu0 0.0
    %371 = vmatpush2.xpose.msra.mxu0 0.0
    %372 = vmatprep.subr.mxu0 0.0
    %373 = vmatpush2.xpose.msra.mxu0 0.0
    %374 = vmatprep.subr.mxu0 0.0
    %375 = vmatpush2.xpose.msra.mxu0 0.0
    %376 = vmatprep.subr.mxu0 0.0
    %377 = vmatpush2.xpose.msra.mxu0 0.0
    %378 = vmatprep.subr.mxu0 0.0
    %379 = vmatpush2.xpose.msra.mxu0 0.0
    %380 = vmatprep.subr.mxu0 0.0
    %381 = vmatpush2.xpose.msra.mxu0 0.0
    %382 = vmatprep.subr.mxu0 0.0
    %383 = vmatpush2.xpose.msra.mxu0 0.0
    %384 = vmatprep.subr.mxu0 0.0
    %385 = vmatpush2.xpose.msra.mxu0 0.0
    %386 = vmatprep.subr.mxu0 0.0
    %387 = vmatpush2.xpose.msra.mxu0 0.0
    %388 = vmatprep.subr.mxu0 0.0
    %389 = vmatpush2.xpose.msra.mxu0 0.0
    %390 = vmatprep.subr.mxu0 0.0
    %391 = vmatpush2.xpose.msra.mxu0 0.0
    %392 = vmatprep.mubr.f32.mxu0 0.0
    %393 = vmatmul.mubr.f32.gmra.mxu0 %v324
    %v394 = vpop.f32.mrf.mxu0
    %v395 = vadd.f32 0.0, %v394
    %v396 = vpop.f32.mrf.mxu0
    %397 = vdwg.mxu0
    %v398 = vsel %vm155, %v395, -inf
    %399 = vmax.xlane.f32.xlu0 %v398
    %v400 = vpop.xlane.xlu0 %399
    %v401 = vsub.f32 %v395, %v400
    %v402 = vmul.f32 %v401, 1.442695
    %v403 = vpow.pop %v402
    %v404 = vsel %vm155, %v403, 0.0
    %405 = vadd.xlane.f32.xlu0 %v404
    %v406 = vpop.xlane.xlu0 %405
    %v407 = vrcp.pop %v406
    %v408 = vmul.f32 %v403, %v407
    %409 = vrot.lane.b32.xlu0 %v148, 56
    %v410 = vpop.permute.xlu0 %409
    %v413 = vsel %vm155, %v408, 0
    %415 = vmatprep.subr.mxu0 0.0
    %416 = vmatpush1.msra.mxu0 0.0
    %417 = vmatprep.subr.mxu0 0.0
    %418 = vmatpush1.msra.mxu0 0.0
    %419 = vmatprep.subr.mxu0 0.0
    %420 = vmatpush1.msra.mxu0 0.0
    %421 = vmatprep.subr.mxu0 0.0
    %422 = vmatpush1.msra.mxu0 0.0
    %423 = vmatprep.subr.mxu0 0.0
    %424 = vmatpush1.msra.mxu0 0.0
    %425 = vmatprep.subr.mxu0 0.0
    %426 = vmatpush1.msra.mxu0 0.0
    %427 = vmatprep.subr.mxu0 0.0
    %428 = vmatpush1.msra.mxu0 0.0
    %429 = vmatprep.subr.mxu0 0.0
    %430 = vmatpush1.msra.mxu0 0.0
    %431 = vmatprep.subr.mxu0 0.0
    %432 = vmatpush1.msra.mxu0 0.0
    %433 = vmatprep.subr.mxu0 0.0
    %434 = vmatpush1.msra.mxu0 0.0
    %435 = vmatprep.subr.mxu0 0.0
    %436 = vmatpush1.msra.mxu0 0.0
    %437 = vmatprep.subr.mxu0 0.0
    %438 = vmatpush1.msra.mxu0 0.0
    %439 = vmatprep.subr.mxu0 0.0
    %440 = vmatpush1.msra.mxu0 0.0
    %441 = vmatprep.subr.mxu0 0.0
    %442 = vmatpush1.msra.mxu0 0.0
    %443 = vmatprep.subr.mxu0 0.0
    %444 = vmatpush1.msra.mxu0 0.0
    %445 = vmatprep.subr.mxu0 0.0
    %446 = vmatpush1.msra.mxu0 %v410
    %447 = vmatprep.subr.mxu0 0.0
    %448 = vmatpush2.msra.mxu0 0.0
    %449 = vmatprep.subr.mxu0 0.0
    %450 = vmatpush2.msra.mxu0 0.0
    %451 = vmatprep.subr.mxu0 0.0
    %452 = vmatpush2.msra.mxu0 0.0
    %453 = vmatprep.subr.mxu0 0.0
    %454 = vmatpush2.msra.mxu0 0.0
    %455 = vmatprep.subr.mxu0 0.0
    %456 = vmatpush2.msra.mxu0 0.0
    %457 = vmatprep.subr.mxu0 0.0
    %458 = vmatpush2.msra.mxu0 0.0
    %459 = vmatprep.subr.mxu0 0.0
    %460 = vmatpush2.msra.mxu0 0.0
    %461 = vmatprep.subr.mxu0 0.0
    %462 = vmatpush2.msra.mxu0 0.0
    %463 = vmatprep.subr.mxu0 0.0
    %464 = vmatpush2.msra.mxu0 0.0
    %465 = vmatprep.subr.mxu0 0.0
    %466 = vmatpush2.msra.mxu0 0.0
    %467 = vmatprep.subr.mxu0 0.0
    %468 = vmatpush2.msra.mxu0 0.0
    %469 = vmatprep.subr.mxu0 0.0
    %470 = vmatpush2.msra.mxu0 0.0
    %471 = vmatprep.subr.mxu0 0.0
    %472 = vmatpush2.msra.mxu0 0.0
    %473 = vmatprep.subr.mxu0 0.0
    %474 = vmatpush2.msra.mxu0 0.0
    %475 = vmatprep.subr.mxu0 0.0
    %476 = vmatpush2.msra.mxu0 0.0
    %477 = vmatprep.subr.mxu0 0.0
    %478 = vmatpush2.msra.mxu0 0.0
    %479 = vmatprep.mubr.f32.mxu0 0.0
    %480 = vmatmul.mubr.f32.gmra.mxu0 %v413
    %v481 = vpop.f32.mrf.mxu0
    %v482 = vadd.f32 0.0, %v481
    %v483 = vpop.f32.mrf.mxu0
    %484 = vdwg.mxu0
    %486 = vrot.lane.b32.xlu0 %v482, 8
    %v487 = vpop.permute.xlu0 %486
    %vm489 = vcmask 130112
    %490 = vst.msk [vmem:[#allocation2] sm:$0xff] %vm489, %v487
    %491 = vrot.lane.b32.xlu0 %v151, 112
    %v492 = vpop.permute.xlu0 %491
    %493 = vrot.lane.b32.xlu0 %v143, 80
    %v494 = vpop.permute.xlu0 %493
    %v495 = vsel %vm155, %v492, 0
    %v497 = vsel %vm155, %v494, 0
    %499 = vmatprep.subr.mxu0 0.0
    %500 = vmatpush1.xpose.msra.mxu0 0.0
    %501 = vmatprep.subr.mxu0 0.0
    %502 = vmatpush1.xpose.msra.mxu0 0.0
    %503 = vmatprep.subr.mxu0 0.0
    %504 = vmatpush1.xpose.msra.mxu0 0.0
    %505 = vmatprep.subr.mxu0 0.0
    %506 = vmatpush1.xpose.msra.mxu0 0.0
    %507 = vmatprep.subr.mxu0 0.0
    %508 = vmatpush1.xpose.msra.mxu0 0.0
    %509 = vmatprep.subr.mxu0 0.0
    %510 = vmatpush1.xpose.msra.mxu0 0.0
    %511 = vmatprep.subr.mxu0 0.0
    %512 = vmatpush1.xpose.msra.mxu0 0.0
    %513 = vmatprep.subr.mxu0 0.0
    %514 = vmatpush1.xpose.msra.mxu0 0.0
    %515 = vmatprep.subr.mxu0 0.0
    %516 = vmatpush1.xpose.msra.mxu0 0.0
    %517 = vmatprep.subr.mxu0 0.0
    %518 = vmatpush1.xpose.msra.mxu0 0.0
    %519 = vmatprep.subr.mxu0 0.0
    %520 = vmatpush1.xpose.msra.mxu0 0.0
    %521 = vmatprep.subr.mxu0 0.0
    %522 = vmatpush1.xpose.msra.mxu0 0.0
    %523 = vmatprep.subr.mxu0 0.0
    %524 = vmatpush1.xpose.msra.mxu0 0.0
    %525 = vmatprep.subr.mxu0 0.0
    %526 = vmatpush1.xpose.msra.mxu0 0.0
    %527 = vmatprep.subr.mxu0 0.0
    %528 = vmatpush1.xpose.msra.mxu0 0.0
    %529 = vmatprep.subr.mxu0 0.0
    %530 = vmatpush1.xpose.msra.mxu0 %v497
    %531 = vmatprep.subr.mxu0 0.0
    %532 = vmatpush2.xpose.msra.mxu0 0.0
    %533 = vmatprep.subr.mxu0 0.0
    %534 = vmatpush2.xpose.msra.mxu0 0.0
    %535 = vmatprep.subr.mxu0 0.0
    %536 = vmatpush2.xpose.msra.mxu0 0.0
    %537 = vmatprep.subr.mxu0 0.0
    %538 = vmatpush2.xpose.msra.mxu0 0.0
    %539 = vmatprep.subr.mxu0 0.0
    %540 = vmatpush2.xpose.msra.mxu0 0.0
    %541 = vmatprep.subr.mxu0 0.0
    %542 = vmatpush2.xpose.msra.mxu0 0.0
    %543 = vmatprep.subr.mxu0 0.0
    %544 = vmatpush2.xpose.msra.mxu0 0.0
    %545 = vmatprep.subr.mxu0 0.0
    %546 = vmatpush2.xpose.msra.mxu0 0.0
    %547 = vmatprep.subr.mxu0 0.0
    %548 = vmatpush2.xpose.msra.mxu0 0.0
    %549 = vmatprep.subr.mxu0 0.0
    %550 = vmatpush2.xpose.msra.mxu0 0.0
    %551 = vmatprep.subr.mxu0 0.0
    %552 = vmatpush2.xpose.msra.mxu0 0.0
    %553 = vmatprep.subr.mxu0 0.0
    %554 = vmatpush2.xpose.msra.mxu0 0.0
    %555 = vmatprep.subr.mxu0 0.0
    %556 = vmatpush2.xpose.msra.mxu0 0.0
    %557 = vmatprep.subr.mxu0 0.0
    %558 = vmatpush2.xpose.msra.mxu0 0.0
    %559 = vmatprep.subr.mxu0 0.0
    %560 = vmatpush2.xpose.msra.mxu0 0.0
    %561 = vmatprep.subr.mxu0 0.0
    %562 = vmatpush2.xpose.msra.mxu0 0.0
    %563 = vmatprep.mubr.f32.mxu0 0.0
    %564 = vmatmul.mubr.f32.gmra.mxu0 %v495
    %v565 = vpop.f32.mrf.mxu0
    %v566 = vadd.f32 0.0, %v565
    %v567 = vpop.f32.mrf.mxu0
    %568 = vdwg.mxu0
    %v569 = vsel %vm155, %v566, -inf
    %570 = vmax.xlane.f32.xlu0 %v569
    %v571 = vpop.xlane.xlu0 %570
    %v572 = vsub.f32 %v566, %v571
    %v573 = vmul.f32 %v572, 1.442695
    %v574 = vpow.pop %v573
    %v575 = vsel %vm155, %v574, 0.0
    %576 = vadd.xlane.f32.xlu0 %v575
    %v577 = vpop.xlane.xlu0 %576
    %v578 = vrcp.pop %v577
    %v579 = vmul.f32 %v574, %v578
    %580 = vrot.lane.b32.xlu0 %v148, 48
    %v581 = vpop.permute.xlu0 %580
    %v584 = vsel %vm155, %v579, 0
    %586 = vmatprep.subr.mxu0 0.0
    %587 = vmatpush1.msra.mxu0 0.0
    %588 = vmatprep.subr.mxu0 0.0
    %589 = vmatpush1.msra.mxu0 0.0
    %590 = vmatprep.subr.mxu0 0.0
    %591 = vmatpush1.msra.mxu0 0.0
    %592 = vmatprep.subr.mxu0 0.0
    %593 = vmatpush1.msra.mxu0 0.0
    %594 = vmatprep.subr.mxu0 0.0
    %595 = vmatpush1.msra.mxu0 0.0
    %596 = vmatprep.subr.mxu0 0.0
    %597 = vmatpush1.msra.mxu0 0.0
    %598 = vmatprep.subr.mxu0 0.0
    %599 = vmatpush1.msra.mxu0 0.0
    %600 = vmatprep.subr.mxu0 0.0
    %601 = vmatpush1.msra.mxu0 0.0
    %602 = vmatprep.subr.mxu0 0.0
    %603 = vmatpush1.msra.mxu0 0.0
    %604 = vmatprep.subr.mxu0 0.0
    %605 = vmatpush1.msra.mxu0 0.0
    %606 = vmatprep.subr.mxu0 0.0
    %607 = vmatpush1.msra.mxu0 0.0
    %608 = vmatprep.subr.mxu0 0.0
    %609 = vmatpush1.msra.mxu0 0.0
    %610 = vmatprep.subr.mxu0 0.0
    %611 = vmatpush1.msra.mxu0 0.0
    %612 = vmatprep.subr.mxu0 0.0
    %613 = vmatpush1.msra.mxu0 0.0
    %614 = vmatprep.subr.mxu0 0.0
    %615 = vmatpush1.msra.mxu0 0.0
    %616 = vmatprep.subr.mxu0 0.0
    %617 = vmatpush1.msra.mxu0 %v581
    %618 = vmatprep.subr.mxu0 0.0
    %619 = vmatpush2.msra.mxu0 0.0
    %620 = vmatprep.subr.mxu0 0.0
    %621 = vmatpush2.msra.mxu0 0.0
    %622 = vmatprep.subr.mxu0 0.0
    %623 = vmatpush2.msra.mxu0 0.0
    %624 = vmatprep.subr.mxu0 0.0
    %625 = vmatpush2.msra.mxu0 0.0
    %626 = vmatprep.subr.mxu0 0.0
    %627 = vmatpush2.msra.mxu0 0.0
    %628 = vmatprep.subr.mxu0 0.0
    %629 = vmatpush2.msra.mxu0 0.0
    %630 = vmatprep.subr.mxu0 0.0
    %631 = vmatpush2.msra.mxu0 0.0
    %632 = vmatprep.subr.mxu0 0.0
    %633 = vmatpush2.msra.mxu0 0.0
    %634 = vmatprep.subr.mxu0 0.0
    %635 = vmatpush2.msra.mxu0 0.0
    %636 = vmatprep.subr.mxu0 0.0
    %637 = vmatpush2.msra.mxu0 0.0
    %638 = vmatprep.subr.mxu0 0.0
    %639 = vmatpush2.msra.mxu0 0.0
    %640 = vmatprep.subr.mxu0 0.0
    %641 = vmatpush2.msra.mxu0 0.0
    %642 = vmatprep.subr.mxu0 0.0
    %643 = vmatpush2.msra.mxu0 0.0
    %644 = vmatprep.subr.mxu0 0.0
    %645 = vmatpush2.msra.mxu0 0.0
    %646 = vmatprep.subr.mxu0 0.0
    %647 = vmatpush2.msra.mxu0 0.0
    %648 = vmatprep.subr.mxu0 0.0
    %649 = vmatpush2.msra.mxu0 0.0
    %650 = vmatprep.mubr.f32.mxu0 0.0
    %651 = vmatmul.mubr.f32.gmra.mxu0 %v584
    %v652 = vpop.f32.mrf.mxu0
    %v653 = vadd.f32 0.0, %v652
    %v654 = vpop.f32.mrf.mxu0
    %655 = vdwg.mxu0
    %657 = vrot.lane.b32.xlu0 %v653, 16
    %v658 = vpop.permute.xlu0 %657
    %vm660 = vcmask 195712
    %661 = vst.msk [vmem:[#allocation2] sm:$0xff] %vm660, %v658
    %662 = vrot.lane.b32.xlu0 %v151, 104
    %v663 = vpop.permute.xlu0 %662
    %664 = vrot.lane.b32.xlu0 %v143, 72
    %v665 = vpop.permute.xlu0 %664
    %v666 = vsel %vm155, %v663, 0
    %v668 = vsel %vm155, %v665, 0
    %670 = vmatprep.subr.mxu0 0.0
    %671 = vmatpush1.xpose.msra.mxu0 0.0
    %672 = vmatprep.subr.mxu0 0.0
    %673 = vmatpush1.xpose.msra.mxu0 0.0
    %674 = vmatprep.subr.mxu0 0.0
    %675 = vmatpush1.xpose.msra.mxu0 0.0
    %676 = vmatprep.subr.mxu0 0.0
    %677 = vmatpush1.xpose.msra.mxu0 0.0
    %678 = vmatprep.subr.mxu0 0.0
    %679 = vmatpush1.xpose.msra.mxu0 0.0
    %680 = vmatprep.subr.mxu0 0.0
    %681 = vmatpush1.xpose.msra.mxu0 0.0
    %682 = vmatprep.subr.mxu0 0.0
    %683 = vmatpush1.xpose.msra.mxu0 0.0
    %684 = vmatprep.subr.mxu0 0.0
    %685 = vmatpush1.xpose.msra.mxu0 0.0
    %686 = vmatprep.subr.mxu0 0.0
    %687 = vmatpush1.xpose.msra.mxu0 0.0
    %688 = vmatprep.subr.mxu0 0.0
    %689 = vmatpush1.xpose.msra.mxu0 0.0
    %690 = vmatprep.subr.mxu0 0.0
    %691 = vmatpush1.xpose.msra.mxu0 0.0
    %692 = vmatprep.subr.mxu0 0.0
    %693 = vmatpush1.xpose.msra.mxu0 0.0
    %694 = vmatprep.subr.mxu0 0.0
    %695 = vmatpush1.xpose.msra.mxu0 0.0
    %696 = vmatprep.subr.mxu0 0.0
    %697 = vmatpush1.xpose.msra.mxu0 0.0
    %698 = vmatprep.subr.mxu0 0.0
    %699 = vmatpush1.xpose.msra.mxu0 0.0
    %700 = vmatprep.subr.mxu0 0.0
    %701 = vmatpush1.xpose.msra.mxu0 %v668
    %702 = vmatprep.subr.mxu0 0.0
    %703 = vmatpush2.xpose.msra.mxu0 0.0
    %704 = vmatprep.subr.mxu0 0.0
    %705 = vmatpush2.xpose.msra.mxu0 0.0
    %706 = vmatprep.subr.mxu0 0.0
    %707 = vmatpush2.xpose.msra.mxu0 0.0
    %708 = vmatprep.subr.mxu0 0.0
    %709 = vmatpush2.xpose.msra.mxu0 0.0
    %710 = vmatprep.subr.mxu0 0.0
    %711 = vmatpush2.xpose.msra.mxu0 0.0
    %712 = vmatprep.subr.mxu0 0.0
    %713 = vmatpush2.xpose.msra.mxu0 0.0
    %714 = vmatprep.subr.mxu0 0.0
    %715 = vmatpush2.xpose.msra.mxu0 0.0
    %716 = vmatprep.subr.mxu0 0.0
    %717 = vmatpush2.xpose.msra.mxu0 0.0
    %718 = vmatprep.subr.mxu0 0.0
    %719 = vmatpush2.xpose.msra.mxu0 0.0
    %720 = vmatprep.subr.mxu0 0.0
    %721 = vmatpush2.xpose.msra.mxu0 0.0
    %722 = vmatprep.subr.mxu0 0.0
    %723 = vmatpush2.xpose.msra.mxu0 0.0
    %724 = vmatprep.subr.mxu0 0.0
    %725 = vmatpush2.xpose.msra.mxu0 0.0
    %726 = vmatprep.subr.mxu0 0.0
    %727 = vmatpush2.xpose.msra.mxu0 0.0
    %728 = vmatprep.subr.mxu0 0.0
    %729 = vmatpush2.xpose.msra.mxu0 0.0
    %730 = vmatprep.subr.mxu0 0.0
    %731 = vmatpush2.xpose.msra.mxu0 0.0
    %732 = vmatprep.subr.mxu0 0.0
    %733 = vmatpush2.xpose.msra.mxu0 0.0
    %734 = vmatprep.mubr.f32.mxu0 0.0
    %735 = vmatmul.mubr.f32.gmra.mxu0 %v666
    %v736 = vpop.f32.mrf.mxu0
    %v737 = vadd.f32 0.0, %v736
    %v738 = vpop.f32.mrf.mxu0
    %739 = vdwg.mxu0
    %v740 = vsel %vm155, %v737, -inf
    %741 = vmax.xlane.f32.xlu0 %v740
    %v742 = vpop.xlane.xlu0 %741
    %v743 = vsub.f32 %v737, %v742
    %v744 = vmul.f32 %v743, 1.442695
    %v745 = vpow.pop %v744
    %v746 = vsel %vm155, %v745, 0.0
    %747 = vadd.xlane.f32.xlu0 %v746
    %v748 = vpop.xlane.xlu0 %747
    %v749 = vrcp.pop %v748
    %v750 = vmul.f32 %v745, %v749
    %751 = vrot.lane.b32.xlu0 %v148, 40
    %v752 = vpop.permute.xlu0 %751
    %v755 = vsel %vm155, %v750, 0
    %757 = vmatprep.subr.mxu0 0.0
    %758 = vmatpush1.msra.mxu0 0.0
    %759 = vmatprep.subr.mxu0 0.0
    %760 = vmatpush1.msra.mxu0 0.0
    %761 = vmatprep.subr.mxu0 0.0
    %762 = vmatpush1.msra.mxu0 0.0
    %763 = vmatprep.subr.mxu0 0.0
    %764 = vmatpush1.msra.mxu0 0.0
    %765 = vmatprep.subr.mxu0 0.0
    %766 = vmatpush1.msra.mxu0 0.0
    %767 = vmatprep.subr.mxu0 0.0
    %768 = vmatpush1.msra.mxu0 0.0
    %769 = vmatprep.subr.mxu0 0.0
    %770 = vmatpush1.msra.mxu0 0.0
    %771 = vmatprep.subr.mxu0 0.0
    %772 = vmatpush1.msra.mxu0 0.0
    %773 = vmatprep.subr.mxu0 0.0
    %774 = vmatpush1.msra.mxu0 0.0
    %775 = vmatprep.subr.mxu0 0.0
    %776 = vmatpush1.msra.mxu0 0.0
    %777 = vmatprep.subr.mxu0 0.0
    %778 = vmatpush1.msra.mxu0 0.0
    %779 = vmatprep.subr.mxu0 0.0
    %780 = vmatpush1.msra.mxu0 0.0
    %781 = vmatprep.subr.mxu0 0.0
    %782 = vmatpush1.msra.mxu0 0.0
    %783 = vmatprep.subr.mxu0 0.0
    %784 = vmatpush1.msra.mxu0 0.0
    %785 = vmatprep.subr.mxu0 0.0
    %786 = vmatpush1.msra.mxu0 0.0
    %787 = vmatprep.subr.mxu0 0.0
    %788 = vmatpush1.msra.mxu0 %v752
    %789 = vmatprep.subr.mxu0 0.0
    %790 = vmatpush2.msra.mxu0 0.0
    %791 = vmatprep.subr.mxu0 0.0
    %792 = vmatpush2.msra.mxu0 0.0
    %793 = vmatprep.subr.mxu0 0.0
    %794 = vmatpush2.msra.mxu0 0.0
    %795 = vmatprep.subr.mxu0 0.0
    %796 = vmatpush2.msra.mxu0 0.0
    %797 = vmatprep.subr.mxu0 0.0
    %798 = vmatpush2.msra.mxu0 0.0
    %799 = vmatprep.subr.mxu0 0.0
    %800 = vmatpush2.msra.mxu0 0.0
    %801 = vmatprep.subr.mxu0 0.0
    %802 = vmatpush2.msra.mxu0 0.0
    %803 = vmatprep.subr.mxu0 0.0
    %804 = vmatpush2.msra.mxu0 0.0
    %805 = vmatprep.subr.mxu0 0.0
    %806 = vmatpush2.msra.mxu0 0.0
    %807 = vmatprep.subr.mxu0 0.0
    %808 = vmatpush2.msra.mxu0 0.0
    %809 = vmatprep.subr.mxu0 0.0
    %810 = vmatpush2.msra.mxu0 0.0
    %811 = vmatprep.subr.mxu0 0.0
    %812 = vmatpush2.msra.mxu0 0.0
    %813 = vmatprep.subr.mxu0 0.0
    %814 = vmatpush2.msra.mxu0 0.0
    %815 = vmatprep.subr.mxu0 0.0
    %816 = vmatpush2.msra.mxu0 0.0
    %817 = vmatprep.subr.mxu0 0.0
    %818 = vmatpush2.msra.mxu0 0.0
    %819 = vmatprep.subr.mxu0 0.0
    %820 = vmatpush2.msra.mxu0 0.0
    %821 = vmatprep.mubr.f32.mxu0 0.0
    %822 = vmatmul.mubr.f32.gmra.mxu0 %v755
    %v823 = vpop.f32.mrf.mxu0
    %v824 = vadd.f32 0.0, %v823
    %v825 = vpop.f32.mrf.mxu0
    %826 = vdwg.mxu0
    %828 = vrot.lane.b32.xlu0 %v824, 24
    %v829 = vpop.permute.xlu0 %828
    %vm831 = vcmask 261312
    %832 = vst.msk [vmem:[#allocation2] sm:$0xff] %vm831, %v829
    %v833 = vld [vmem:[#allocation2] sm:$0xff]
    %v834 = vld [vmem:[%s5] sm:$0xff]
    %v835 = vld [vmem:[%s5 + $0x8] sm:$0xff]
    %v836 = vld [vmem:[%s5 + $0x10] sm:$0xff]
    %v837 = vld [vmem:[%s5 + $0x18] sm:$0xff]
    %v839 = vsel %vm69, %v833, 0
    %841 = vmatprep.subr.mxu0 0.0
    %842 = vmatpush1.msra.mxu0 0.0
    %843 = vmatprep.subr.mxu0 0.0
    %844 = vmatpush1.msra.mxu0 0.0
    %845 = vmatprep.subr.mxu0 0.0
    %846 = vmatpush1.msra.mxu0 0.0
    %847 = vmatprep.subr.mxu0 0.0
    %848 = vmatpush1.msra.mxu0 0.0
    %849 = vmatprep.subr.mxu0 0.0
    %850 = vmatpush1.msra.mxu0 0.0
    %851 = vmatprep.subr.mxu0 0.0
    %852 = vmatpush1.msra.mxu0 0.0
    %853 = vmatprep.subr.mxu0 0.0
    %854 = vmatpush1.msra.mxu0 0.0
    %855 = vmatprep.subr.mxu0 0.0
    %856 = vmatpush1.msra.mxu0 0.0
    %857 = vmatprep.subr.mxu0 0.0
    %858 = vmatpush1.msra.mxu0 0.0
    %859 = vmatprep.subr.mxu0 0.0
    %860 = vmatpush1.msra.mxu0 0.0
    %861 = vmatprep.subr.mxu0 0.0
    %862 = vmatpush1.msra.mxu0 0.0
    %863 = vmatprep.subr.mxu0 0.0
    %864 = vmatpush1.msra.mxu0 0.0
    %865 = vmatprep.subr.mxu0 0.0
    %866 = vmatpush1.msra.mxu0 %v837
    %867 = vmatprep.subr.mxu0 0.0
    %868 = vmatpush1.msra.mxu0 %v836
    %869 = vmatprep.subr.mxu0 0.0
    %870 = vmatpush1.msra.mxu0 %v835
    %871 = vmatprep.subr.mxu0 0.0
    %872 = vmatpush1.msra.mxu0 %v834
    %873 = vmatprep.subr.mxu0 0.0
    %874 = vmatpush2.msra.mxu0 0.0
    %875 = vmatprep.subr.mxu0 0.0
    %876 = vmatpush2.msra.mxu0 0.0
    %877 = vmatprep.subr.mxu0 0.0
    %878 = vmatpush2.msra.mxu0 0.0
    %879 = vmatprep.subr.mxu0 0.0
    %880 = vmatpush2.msra.mxu0 0.0
    %881 = vmatprep.subr.mxu0 0.0
    %882 = vmatpush2.msra.mxu0 0.0
    %883 = vmatprep.subr.mxu0 0.0
    %884 = vmatpush2.msra.mxu0 0.0
    %885 = vmatprep.subr.mxu0 0.0
    %886 = vmatpush2.msra.mxu0 0.0
    %887 = vmatprep.subr.mxu0 0.0
    %888 = vmatpush2.msra.mxu0 0.0
    %889 = vmatprep.subr.mxu0 0.0
    %890 = vmatpush2.msra.mxu0 0.0
    %891 = vmatprep.subr.mxu0 0.0
    %892 = vmatpush2.msra.mxu0 0.0
    %893 = vmatprep.subr.mxu0 0.0
    %894 = vmatpush2.msra.mxu0 0.0
    %895 = vmatprep.subr.mxu0 0.0
    %896 = vmatpush2.msra.mxu0 0.0
    %897 = vmatprep.subr.mxu0 0.0
    %898 = vmatpush2.msra.mxu0 0.0
    %899 = vmatprep.subr.mxu0 0.0
    %900 = vmatpush2.msra.mxu0 0.0
    %901 = vmatprep.subr.mxu0 0.0
    %902 = vmatpush2.msra.mxu0 0.0
    %903 = vmatprep.subr.mxu0 0.0
    %904 = vmatpush2.msra.mxu0 0.0
    %905 = vmatprep.mubr.f32.mxu0 0.0
    %906 = vmatmul.mubr.f32.gmra.mxu0 %v839
    %v907 = vpop.f32.mrf.mxu0
    %v908 = vadd.f32 0.0, %v907
    %v909 = vpop.f32.mrf.mxu0
    %910 = vdwg.mxu0
    %v911 = vld [vmem:[%s0] sm:$0xff]
    %v912 = vld [vmem:[%s0 + $0x8] sm:$0xff]
    %v913 = vadd.f32 %v908, %v911
    %v914 = vadd.f32 %v908, %v912
    %v915 = vsel %vm69, %v913, 0.0
    %916 = vadd.xlane.f32.xlu0 %v915
    %v917 = vpop.xlane.xlu0 %916
    %v918 = vsel %vm69, %v914, 0.0
    %919 = vadd.xlane.f32.xlu0 %v918
    %v920 = vpop.xlane.xlu0 %919
    %v921 = vrcp.pop 32.0
    %v922 = vmul.f32 %v917, %v921
    %v923 = vmul.f32 %v920, %v921
    %v924 = vsub.f32 %v913, %v922
    %v925 = vsub.f32 %v914, %v923
    %v926 = vmul.f32 %v924, %v924
    %v927 = vmul.f32 %v925, %v925
    %v928 = vsel %vm69, %v926, 0.0
    %929 = vadd.xlane.f32.xlu0 %v928
    %v930 = vpop.xlane.xlu0 %929
    %v931 = vsel %vm69, %v927, 0.0
    %932 = vadd.xlane.f32.xlu0 %v931
    %v933 = vpop.xlane.xlu0 %932
    %v934 = vmul.f32 %v930, %v921
    %v935 = vmul.f32 %v933, %v921
    %v936 = vadd.f32 %v934, 1e-05
    %v937 = vadd.f32 %v935, 1e-05
    %v938 = vrsqrt.pop %v936
    %v939 = vrsqrt.pop %v937
    %v940 = vmul.f32 %v924, %v938
    %v941 = vmul.f32 %v925, %v939
    %v942 = vld [vmem:[%s9] sm:$0x1]
    %v944 = vlaneseq
    %v945 = vshrl.u32 %v944, 7
    %v946 = vsub.s32 0, %v945
    %v947 = vrot.slane %v942, %v946
    %v949 = vmul.f32 %v940, %v947
    %v950 = vmul.f32 %v941, %v947
    %v951 = vld [vmem:[%s10] sm:$0x1]
    %v953 = vlaneseq
    %v954 = vshrl.u32 %v953, 7
    %v955 = vsub.s32 0, %v954
    %v956 = vrot.slane %v951, %v955
    %v958 = vadd.f32 %v949, %v956
    %v959 = vadd.f32 %v950, %v956
    %v960 = vld [vmem:[%s2] sm:$0xff]
    %v961 = vadd.f32 %v958, %v960
    %v962 = vld [vmem:[%s6] sm:$0xff]
    %v963 = vld [vmem:[%s6 + $0x8] sm:$0xff]
    %v964 = vld [vmem:[%s6 + $0x10] sm:$0xff]
    %v965 = vld [vmem:[%s6 + $0x18] sm:$0xff]
    %v967 = vsel %vm69, %v961, 0
    %969 = vmatprep.subr.mxu0 0.0
    %970 = vmatpush1.msra.mxu0 0.0
    %971 = vmatprep.subr.mxu0 0.0
    %972 = vmatpush1.msra.mxu0 0.0
    %973 = vmatprep.subr.mxu0 0.0
    %974 = vmatpush1.msra.mxu0 0.0
    %975 = vmatprep.subr.mxu0 0.0
    %976 = vmatpush1.msra.mxu0 0.0
    %977 = vmatprep.subr.mxu0 0.0
    %978 = vmatpush1.msra.mxu0 0.0
    %979 = vmatprep.subr.mxu0 0.0
    %980 = vmatpush1.msra.mxu0 0.0
    %981 = vmatprep.subr.mxu0 0.0
    %982 = vmatpush1.msra.mxu0 0.0
    %983 = vmatprep.subr.mxu0 0.0
    %984 = vmatpush1.msra.mxu0 0.0
    %985 = vmatprep.subr.mxu0 0.0
    %986 = vmatpush1.msra.mxu0 0.0
    %987 = vmatprep.subr.mxu0 0.0
    %988 = vmatpush1.msra.mxu0 0.0
    %989 = vmatprep.subr.mxu0 0.0
    %990 = vmatpush1.msra.mxu0 0.0
    %991 = vmatprep.subr.mxu0 0.0
    %992 = vmatpush1.msra.mxu0 0.0
    %993 = vmatprep.subr.mxu0 0.0
    %994 = vmatpush1.msra.mxu0 %v965
    %995 = vmatprep.subr.mxu0 0.0
    %996 = vmatpush1.msra.mxu0 %v964
    %997 = vmatprep.subr.mxu0 0.0
    %998 = vmatpush1.msra.mxu0 %v963
    %999 = vmatprep.subr.mxu0 0.0
    %1000 = vmatpush1.msra.mxu0 %v962
    %1001 = vmatprep.subr.mxu0 0.0
    %1002 = vmatpush2.msra.mxu0 0.0
    %1003 = vmatprep.subr.mxu0 0.0
    %1004 = vmatpush2.msra.mxu0 0.0
    %1005 = vmatprep.subr.mxu0 0.0
    %1006 = vmatpush2.msra.mxu0 0.0
    %1007 = vmatprep.subr.mxu0 0.0
    %1008 = vmatpush2.msra.mxu0 0.0
    %1009 = vmatprep.subr.mxu0 0.0
    %1010 = vmatpush2.msra.mxu0 0.0
    %1011 = vmatprep.subr.mxu0 0.0
    %1012 = vmatpush2.msra.mxu0 0.0
    %1013 = vmatprep.subr.mxu0 0.0
    %1014 = vmatpush2.msra.mxu0 0.0
    %1015 = vmatprep.subr.mxu0 0.0
    %1016 = vmatpush2.msra.mxu0 0.0
    %1017 = vmatprep.subr.mxu0 0.0
    %1018 = vmatpush2.msra.mxu0 0.0
    %1019 = vmatprep.subr.mxu0 0.0
    %1020 = vmatpush2.msra.mxu0 0.0
    %1021 = vmatprep.subr.mxu0 0.0
    %1022 = vmatpush2.msra.mxu0 0.0
    %1023 = vmatprep.subr.mxu0 0.0
    %1024 = vmatpush2.msra.mxu0 0.0
    %1025 = vmatprep.subr.mxu0 0.0
    %1026 = vmatpush2.msra.mxu0 0.0
    %1027 = vmatprep.subr.mxu0 0.0
    %1028 = vmatpush2.msra.mxu0 0.0
    %1029 = vmatprep.subr.mxu0 0.0
    %1030 = vmatpush2.msra.mxu0 0.0
    %1031 = vmatprep.subr.mxu0 0.0
    %1032 = vmatpush2.msra.mxu0 0.0
    %1033 = vmatprep.mubr.f32.mxu0 0.0
    %1034 = vmatmul.mubr.f32.gmra.mxu0 %v967
    %v1035 = vpop.f32.mrf.mxu0
    %v1036 = vadd.f32 0.0, %v1035
    %v1037 = vpop.f32.mrf.mxu0
    %1038 = vdwg.mxu0
    %v1039 = vmul.f32 %v1036, 0.35355338
    %v1040 = vld [vmem:[%s3] sm:$0xff]
    %v1041 = vld [vmem:[%s3 + $0x8] sm:$0xff]
    %v1042 = vld [vmem:[%s3 + $0x10] sm:$0xff]
    %v1043 = vld [vmem:[%s3 + $0x18] sm:$0xff]
    %v1044 = vld [vmem:[%s7] sm:$0xff]
    %v1045 = vld [vmem:[%s7 + $0x8] sm:$0xff]
    %v1046 = vld [vmem:[%s7 + $0x10] sm:$0xff]
    %v1047 = vld [vmem:[%s7 + $0x18] sm:$0xff]
    %v1049 = vsel %vm69, %v1040, 0
    %v1052 = vsel %vm69, %v1041, 0
    %v1055 = vsel %vm69, %v1042, 0
    %v1058 = vsel %vm69, %v1043, 0
    %1060 = vmatprep.subr.mxu0 0.0
    %1061 = vmatpush1.msra.mxu0 0.0
    %1062 = vmatprep.subr.mxu0 0.0
    %1063 = vmatpush1.msra.mxu0 0.0
    %1064 = vmatprep.subr.mxu0 0.0
    %1065 = vmatpush1.msra.mxu0 0.0
    %1066 = vmatprep.subr.mxu0 0.0
    %1067 = vmatpush1.msra.mxu0 0.0
    %1068 = vmatprep.subr.mxu0 0.0
    %1069 = vmatpush1.msra.mxu0 0.0
    %1070 = vmatprep.subr.mxu0 0.0
    %1071 = vmatpush1.msra.mxu0 0.0
    %1072 = vmatprep.subr.mxu0 0.0
    %1073 = vmatpush1.msra.mxu0 0.0
    %1074 = vmatprep.subr.mxu0 0.0
    %1075 = vmatpush1.msra.mxu0 0.0
    %1076 = vmatprep.subr.mxu0 0.0
    %1077 = vmatpush1.msra.mxu0 0.0
    %1078 = vmatprep.subr.mxu0 0.0
    %1079 = vmatpush1.msra.mxu0 0.0
    %1080 = vmatprep.subr.mxu0 0.0
    %1081 = vmatpush1.msra.mxu0 0.0
    %1082 = vmatprep.subr.mxu0 0.0
    %1083 = vmatpush1.msra.mxu0 0.0
    %1084 = vmatprep.subr.mxu0 0.0
    %1085 = vmatpush1.msra.mxu0 %v1047
    %1086 = vmatprep.subr.mxu0 0.0
    %1087 = vmatpush1.msra.mxu0 %v1046
    %1088 = vmatprep.subr.mxu0 0.0
    %1089 = vmatpush1.msra.mxu0 %v1045
    %1090 = vmatprep.subr.mxu0 0.0
    %1091 = vmatpush1.msra.mxu0 %v1044
    %1092 = vmatprep.subr.mxu0 0.0
    %1093 = vmatpush2.msra.mxu0 0.0
    %1094 = vmatprep.subr.mxu0 0.0
    %1095 = vmatpush2.msra.mxu0 0.0
    %1096 = vmatprep.subr.mxu0 0.0
    %1097 = vmatpush2.msra.mxu0 0.0
    %1098 = vmatprep.subr.mxu0 0.0
    %1099 = vmatpush2.msra.mxu0 0.0
    %1100 = vmatprep.subr.mxu0 0.0
    %1101 = vmatpush2.msra.mxu0 0.0
    %1102 = vmatprep.subr.mxu0 0.0
    %1103 = vmatpush2.msra.mxu0 0.0
    %1104 = vmatprep.subr.mxu0 0.0
    %1105 = vmatpush2.msra.mxu0 0.0
    %1106 = vmatprep.subr.mxu0 0.0
    %1107 = vmatpush2.msra.mxu0 0.0
    %1108 = vmatprep.subr.mxu0 0.0
    %1109 = vmatpush2.msra.mxu0 0.0
    %1110 = vmatprep.subr.mxu0 0.0
    %1111 = vmatpush2.msra.mxu0 0.0
    %1112 = vmatprep.subr.mxu0 0.0
    %1113 = vmatpush2.msra.mxu0 0.0
    %1114 = vmatprep.subr.mxu0 0.0
    %1115 = vmatpush2.msra.mxu0 0.0
    %1116 = vmatprep.subr.mxu0 0.0
    %1117 = vmatpush2.msra.mxu0 0.0
    %1118 = vmatprep.subr.mxu0 0.0
    %1119 = vmatpush2.msra.mxu0 0.0
    %1120 = vmatprep.subr.mxu0 0.0
    %1121 = vmatpush2.msra.mxu0 0.0
    %1122 = vmatprep.subr.mxu0 0.0
    %1123 = vmatpush2.msra.mxu0 0.0
    %1124 = vmatprep.mubr.f32.mxu0 0.0
    %1125 = vmatmul.mubr.f32.gmra.mxu0 %v1049
    %v1126 = vpop.f32.mrf.mxu0
    %v1127 = vadd.f32 0.0, %v1126
    %v1128 = vpop.f32.mrf.mxu0
    %1129 = vmatprep.mubr.f32.mxu0 0.0
    %1130 = vmatmul.mubr.f32.gmra.mxu0 %v1052
    %v1131 = vpop.f32.mrf.mxu0
    %v1132 = vadd.f32 0.0, %v1131
    %v1133 = vpop.f32.mrf.mxu0
    %1134 = vmatprep.mubr.f32.mxu0 0.0
    %1135 = vmatmul.mubr.f32.gmra.mxu0 %v1055
    %v1136 = vpop.f32.mrf.mxu0
    %v1137 = vadd.f32 0.0, %v1136
    %v1138 = vpop.f32.mrf.mxu0
    %1139 = vmatprep.mubr.f32.mxu0 0.0
    %1140 = vmatmul.mubr.f32.gmra.mxu0 %v1058
    %v1141 = vpop.f32.mrf.mxu0
    %v1142 = vadd.f32 0.0, %v1141
    %v1143 = vpop.f32.mrf.mxu0
    %1144 = vdwg.mxu0
    %v1146 = vsel %vm155, %v1039, 0
    %v1149 = vsel %vm155, %v1127, 0
    %v1152 = vsel %vm155, %v1132, 0
    %1154 = vmatprep.subr.mxu0 0.0
    %1155 = vmatpush1.xpose.msra.mxu0 0.0
    %1156 = vmatprep.subr.mxu0 0.0
    %1157 = vmatpush1.xpose.msra.mxu0 0.0
    %1158 = vmatprep.subr.mxu0 0.0
    %1159 = vmatpush1.xpose.msra.mxu0 0.0
    %1160 = vmatprep.subr.mxu0 0.0
    %1161 = vmatpush1.xpose.msra.mxu0 0.0
    %1162 = vmatprep.subr.mxu0 0.0
    %1163 = vmatpush1.xpose.msra.mxu0 0.0
    %1164 = vmatprep.subr.mxu0 0.0
    %1165 = vmatpush1.xpose.msra.mxu0 0.0
    %1166 = vmatprep.subr.mxu0 0.0
    %1167 = vmatpush1.xpose.msra.mxu0 0.0
    %1168 = vmatprep.subr.mxu0 0.0
    %1169 = vmatpush1.xpose.msra.mxu0 0.0
    %1170 = vmatprep.subr.mxu0 0.0
    %1171 = vmatpush1.xpose.msra.mxu0 0.0
    %1172 = vmatprep.subr.mxu0 0.0
    %1173 = vmatpush1.xpose.msra.mxu0 0.0
    %1174 = vmatprep.subr.mxu0 0.0
    %1175 = vmatpush1.xpose.msra.mxu0 0.0
    %1176 = vmatprep.subr.mxu0 0.0
    %1177 = vmatpush1.xpose.msra.mxu0 0.0
    %1178 = vmatprep.subr.mxu0 0.0
    %1179 = vmatpush1.xpose.msra.mxu0 0.0
    %1180 = vmatprep.subr.mxu0 0.0
    %1181 = vmatpush1.xpose.msra.mxu0 0.0
    %1182 = vmatprep.subr.mxu0 0.0
    %1183 = vmatpush1.xpose.msra.mxu0 %v1152
    %1184 = vmatprep.subr.mxu0 0.0
    %1185 = vmatpush1.xpose.msra.mxu0 %v1149
    %1186 = vmatprep.subr.mxu0 0.0
    %1187 = vmatpush2.xpose.msra.mxu0 0.0
    %1188 = vmatprep.subr.mxu0 0.0
    %1189 = vmatpush2.xpose.msra.mxu0 0.0
    %1190 = vmatprep.subr.mxu0 0.0
    %1191 = vmatpush2.xpose.msra.mxu0 0.0
    %1192 = vmatprep.subr.mxu0 0.0
    %1193 = vmatpush2.xpose.msra.mxu0 0.0
    %1194 = vmatprep.subr.mxu0 0.0
    %1195 = vmatpush2.xpose.msra.mxu0 0.0
    %1196 = vmatprep.subr.mxu0 0.0
    %1197 = vmatpush2.xpose.msra.mxu0 0.0
    %1198 = vmatprep.subr.mxu0 0.0
    %1199 = vmatpush2.xpose.msra.mxu0 0.0
    %1200 = vmatprep.subr.mxu0 0.0
    %1201 = vmatpush2.xpose.msra.mxu0 0.0
    %1202 = vmatprep.subr.mxu0 0.0
    %1203 = vmatpush2.xpose.msra.mxu0 0.0
    %1204 = vmatprep.subr.mxu0 0.0
    %1205 = vmatpush2.xpose.msra.mxu0 0.0
    %1206 = vmatprep.subr.mxu0 0.0
    %1207 = vmatpush2.xpose.msra.mxu0 0.0
    %1208 = vmatprep.subr.mxu0 0.0
    %1209 = vmatpush2.xpose.msra.mxu0 0.0
    %1210 = vmatprep.subr.mxu0 0.0
    %1211 = vmatpush2.xpose.msra.mxu0 0.0
    %1212 = vmatprep.subr.mxu0 0.0
    %1213 = vmatpush2.xpose.msra.mxu0 0.0
    %1214 = vmatprep.subr.mxu0 0.0
    %1215 = vmatpush2.xpose.msra.mxu0 0.0
    %1216 = vmatprep.subr.mxu0 0.0
    %1217 = vmatpush2.xpose.msra.mxu0 0.0
    %1218 = vmatprep.mubr.f32.mxu0 0.0
    %1219 = vmatmul.mubr.f32.gmra.mxu0 %v1146
    %v1220 = vpop.f32.mrf.mxu0
    %v1221 = vadd.f32 0.0, %v1220
    %v1222 = vpop.f32.mrf.mxu0
    %1223 = vdwg.mxu0
    %vm1224 = vcmask 130048
    %v1225 = vsel %vm1224, %v1221, -inf
    %1226 = vmax.xlane.f32.xlu0 %v1225
    %v1227 = vpop.xlane.xlu0 %1226
    %v1228 = vsub.f32 %v1221, %v1227
    %v1229 = vmul.f32 %v1228, 1.442695
    %v1230 = vpow.pop %v1229
    %v1231 = vsel %vm1224, %v1230, 0.0
    %1232 = vadd.xlane.f32.xlu0 %v1231
    %v1233 = vpop.xlane.xlu0 %1232
    %v1234 = vrcp.pop %v1233
    %v1235 = vmul.f32 %v1230, %v1234
    %1238 = vrot.lane.b32.xlu0 %v1137, 96
    %v1239 = vpop.permute.xlu0 %1238
    %1240 = vrot.lane.b32.xlu0 %v1142, 96
    %v1241 = vpop.permute.xlu0 %1240
    %v1245 = vsel %vm1224, %v1235, 0
    %1247 = vmatprep.subr.mxu0 0.0
    %1248 = vmatpush1.msra.mxu0 0.0
    %1249 = vmatprep.subr.mxu0 0.0
    %1250 = vmatpush1.msra.mxu0 0.0
    %1251 = vmatprep.subr.mxu0 0.0
    %1252 = vmatpush1.msra.mxu0 0.0
    %1253 = vmatprep.subr.mxu0 0.0
    %1254 = vmatpush1.msra.mxu0 0.0
    %1255 = vmatprep.subr.mxu0 0.0
    %1256 = vmatpush1.msra.mxu0 0.0
    %1257 = vmatprep.subr.mxu0 0.0
    %1258 = vmatpush1.msra.mxu0 0.0
    %1259 = vmatprep.subr.mxu0 0.0
    %1260 = vmatpush1.msra.mxu0 0.0
    %1261 = vmatprep.subr.mxu0 0.0
    %1262 = vmatpush1.msra.mxu0 0.0
    %1263 = vmatprep.subr.mxu0 0.0
    %1264 = vmatpush1.msra.mxu0 0.0
    %1265 = vmatprep.subr.mxu0 0.0
    %1266 = vmatpush1.msra.mxu0 0.0
    %1267 = vmatprep.subr.mxu0 0.0
    %1268 = vmatpush1.msra.mxu0 0.0
    %1269 = vmatprep.subr.mxu0 0.0
    %1270 = vmatpush1.msra.mxu0 0.0
    %1271 = vmatprep.subr.mxu0 0.0
    %1272 = vmatpush1.msra.mxu0 0.0
    %1273 = vmatprep.subr.mxu0 0.0
    %1274 = vmatpush1.msra.mxu0 0.0
    %1275 = vmatprep.subr.mxu0 0.0
    %1276 = vmatpush1.msra.mxu0 %v1241
    %1277 = vmatprep.subr.mxu0 0.0
    %1278 = vmatpush1.msra.mxu0 %v1239
    %1279 = vmatprep.subr.mxu0 0.0
    %1280 = vmatpush2.msra.mxu0 0.0
    %1281 = vmatprep.subr.mxu0 0.0
    %1282 = vmatpush2.msra.mxu0 0.0
    %1283 = vmatprep.subr.mxu0 0.0
    %1284 = vmatpush2.msra.mxu0 0.0
    %1285 = vmatprep.subr.mxu0 0.0
    %1286 = vmatpush2.msra.mxu0 0.0
    %1287 = vmatprep.subr.mxu0 0.0
    %1288 = vmatpush2.msra.mxu0 0.0
    %1289 = vmatprep.subr.mxu0 0.0
    %1290 = vmatpush2.msra.mxu0 0.0
    %1291 = vmatprep.subr.mxu0 0.0
    %1292 = vmatpush2.msra.mxu0 0.0
    %1293 = vmatprep.subr.mxu0 0.0
    %1294 = vmatpush2.msra.mxu0 0.0
    %1295 = vmatprep.subr.mxu0 0.0
    %1296 = vmatpush2.msra.mxu0 0.0
    %1297 = vmatprep.subr.mxu0 0.0
    %1298 = vmatpush2.msra.mxu0 0.0
    %1299 = vmatprep.subr.mxu0 0.0
    %1300 = vmatpush2.msra.mxu0 0.0
    %1301 = vmatprep.subr.mxu0 0.0
    %1302 = vmatpush2.msra.mxu0 0.0
    %1303 = vmatprep.subr.mxu0 0.0
    %1304 = vmatpush2.msra.mxu0 0.0
    %1305 = vmatprep.subr.mxu0 0.0
    %1306 = vmatpush2.msra.mxu0 0.0
    %1307 = vmatprep.subr.mxu0 0.0
    %1308 = vmatpush2.msra.mxu0 0.0
    %1309 = vmatprep.subr.mxu0 0.0
    %1310 = vmatpush2.msra.mxu0 0.0
    %1311 = vmatprep.mubr.f32.mxu0 0.0
    %1312 = vmatmul.mubr.f32.gmra.mxu0 %v1245
    %v1313 = vpop.f32.mrf.mxu0
    %v1314 = vadd.f32 0.0, %v1313
    %v1315 = vpop.f32.mrf.mxu0
    %1316 = vdwg.mxu0
    %1317 = vst.msk [vmem:[#allocation2] sm:$0xff] %vm155, %v1314
    %1318 = vrot.lane.b32.xlu0 %v1039, 120
    %v1319 = vpop.permute.xlu0 %1318
    %1320 = vrot.lane.b32.xlu0 %v1127, 120
    %v1321 = vpop.permute.xlu0 %1320
    %1322 = vrot.lane.b32.xlu0 %v1132, 120
    %v1323 = vpop.permute.xlu0 %1322
    %v1324 = vsel %vm155, %v1319, 0
    %v1326 = vsel %vm155, %v1321, 0
    %v1328 = vsel %vm155, %v1323, 0
    %1330 = vmatprep.subr.mxu0 0.0
    %1331 = vmatpush1.xpose.msra.mxu0 0.0
    %1332 = vmatprep.subr.mxu0 0.0
    %1333 = vmatpush1.xpose.msra.mxu0 0.0
    %1334 = vmatprep.subr.mxu0 0.0
    %1335 = vmatpush1.xpose.msra.mxu0 0.0
    %1336 = vmatprep.subr.mxu0 0.0
    %1337 = vmatpush1.xpose.msra.mxu0 0.0
    %1338 = vmatprep.subr.mxu0 0.0
    %1339 = vmatpush1.xpose.msra.mxu0 0.0
    %1340 = vmatprep.subr.mxu0 0.0
    %1341 = vmatpush1.xpose.msra.mxu0 0.0
    %1342 = vmatprep.subr.mxu0 0.0
    %1343 = vmatpush1.xpose.msra.mxu0 0.0
    %1344 = vmatprep.subr.mxu0 0.0
    %1345 = vmatpush1.xpose.msra.mxu0 0.0
    %1346 = vmatprep.subr.mxu0 0.0
    %1347 = vmatpush1.xpose.msra.mxu0 0.0
    %1348 = vmatprep.subr.mxu0 0.0
    %1349 = vmatpush1.xpose.msra.mxu0 0.0
    %1350 = vmatprep.subr.mxu0 0.0
    %1351 = vmatpush1.xpose.msra.mxu0 0.0
    %1352 = vmatprep.subr.mxu0 0.0
    %1353 = vmatpush1.xpose.msra.mxu0 0.0
    %1354 = vmatprep.subr.mxu0 0.0
    %1355 = vmatpush1.xpose.msra.mxu0 0.0
    %1356 = vmatprep.subr.mxu0 0.0
    %1357 = vmatpush1.xpose.msra.mxu0 0.0
    %1358 = vmatprep.subr.mxu0 0.0
    %1359 = vmatpush1.xpose.msra.mxu0 %v1328
    %1360 = vmatprep.subr.mxu0 0.0
    %1361 = vmatpush1.xpose.msra.mxu0 %v1326
    %1362 = vmatprep.subr.mxu0 0.0
    %1363 = vmatpush2.xpose.msra.mxu0 0.0
    %1364 = vmatprep.subr.mxu0 0.0
    %1365 = vmatpush2.xpose.msra.mxu0 0.0
    %1366 = vmatprep.subr.mxu0 0.0
    %1367 = vmatpush2.xpose.msra.mxu0 0.0
    %1368 = vmatprep.subr.mxu0 0.0
    %1369 = vmatpush2.xpose.msra.mxu0 0.0
    %1370 = vmatprep.subr.mxu0 0.0
    %1371 = vmatpush2.xpose.msra.mxu0 0.0
    %1372 = vmatprep.subr.mxu0 0.0
    %1373 = vmatpush2.xpose.msra.mxu0 0.0
    %1374 = vmatprep.subr.mxu0 0.0
    %1375 = vmatpush2.xpose.msra.mxu0 0.0
    %1376 = vmatprep.subr.mxu0 0.0
    %1377 = vmatpush2.xpose.msra.mxu0 0.0
    %1378 = vmatprep.subr.mxu0 0.0
    %1379 = vmatpush2.xpose.msra.mxu0 0.0
    %1380 = vmatprep.subr.mxu0 0.0
    %1381 = vmatpush2.xpose.msra.mxu0 0.0
    %1382 = vmatprep.subr.mxu0 0.0
    %1383 = vmatpush2.xpose.msra.mxu0 0.0
    %1384 = vmatprep.subr.mxu0 0.0
    %1385 = vmatpush2.xpose.msra.mxu0 0.0
    %1386 = vmatprep.subr.mxu0 0.0
    %1387 = vmatpush2.xpose.msra.mxu0 0.0
    %1388 = vmatprep.subr.mxu0 0.0
    %1389 = vmatpush2.xpose.msra.mxu0 0.0
    %1390 = vmatprep.subr.mxu0 0.0
    %1391 = vmatpush2.xpose.msra.mxu0 0.0
    %1392 = vmatprep.subr.mxu0 0.0
    %1393 = vmatpush2.xpose.msra.mxu0 0.0
    %1394 = vmatprep.mubr.f32.mxu0 0.0
    %1395 = vmatmul.mubr.f32.gmra.mxu0 %v1324
    %v1396 = vpop.f32.mrf.mxu0
    %v1397 = vadd.f32 0.0, %v1396
    %v1398 = vpop.f32.mrf.mxu0
    %1399 = vdwg.mxu0
    %v1400 = vsel %vm1224, %v1397, -inf
    %1401 = vmax.xlane.f32.xlu0 %v1400
    %v1402 = vpop.xlane.xlu0 %1401
    %v1403 = vsub.f32 %v1397, %v1402
    %v1404 = vmul.f32 %v1403, 1.442695
    %v1405 = vpow.pop %v1404
    %v1406 = vsel %vm1224, %v1405, 0.0
    %1407 = vadd.xlane.f32.xlu0 %v1406
    %v1408 = vpop.xlane.xlu0 %1407
    %v1409 = vrcp.pop %v1408
    %v1410 = vmul.f32 %v1405, %v1409
    %1411 = vrot.lane.b32.xlu0 %v1137, 88
    %v1412 = vpop.permute.xlu0 %1411
    %1413 = vrot.lane.b32.xlu0 %v1142, 88
    %v1414 = vpop.permute.xlu0 %1413
    %v1418 = vsel %vm1224, %v1410, 0
    %1420 = vmatprep.subr.mxu0 0.0
    %1421 = vmatpush1.msra.mxu0 0.0
    %1422 = vmatprep.subr.mxu0 0.0
    %1423 = vmatpush1.msra.mxu0 0.0
    %1424 = vmatprep.subr.mxu0 0.0
    %1425 = vmatpush1.msra.mxu0 0.0
    %1426 = vmatprep.subr.mxu0 0.0
    %1427 = vmatpush1.msra.mxu0 0.0
    %1428 = vmatprep.subr.mxu0 0.0
    %1429 = vmatpush1.msra.mxu0 0.0
    %1430 = vmatprep.subr.mxu0 0.0
    %1431 = vmatpush1.msra.mxu0 0.0
    %1432 = vmatprep.subr.mxu0 0.0
    %1433 = vmatpush1.msra.mxu0 0.0
    %1434 = vmatprep.subr.mxu0 0.0
    %1435 = vmatpush1.msra.mxu0 0.0
    %1436 = vmatprep.subr.mxu0 0.0
    %1437 = vmatpush1.msra.mxu0 0.0
    %1438 = vmatprep.subr.mxu0 0.0
    %1439 = vmatpush1.msra.mxu0 0.0
    %1440 = vmatprep.subr.mxu0 0.0
    %1441 = vmatpush1.msra.mxu0 0.0
    %1442 = vmatprep.subr.mxu0 0.0
    %1443 = vmatpush1.msra.mxu0 0.0
    %1444 = vmatprep.subr.mxu0 0.0
    %1445 = vmatpush1.msra.mxu0 0.0
    %1446 = vmatprep.subr.mxu0 0.0
    %1447 = vmatpush1.msra.mxu0 0.0
    %1448 = vmatprep.subr.mxu0 0.0
    %1449 = vmatpush1.msra.mxu0 %v1414
    %1450 = vmatprep.subr.mxu0 0.0
    %1451 = vmatpush1.msra.mxu0 %v1412
    %1452 = vmatprep.subr.mxu0 0.0
    %1453 = vmatpush2.msra.mxu0 0.0
    %1454 = vmatprep.subr.mxu0 0.0
    %1455 = vmatpush2.msra.mxu0 0.0
    %1456 = vmatprep.subr.mxu0 0.0
    %1457 = vmatpush2.msra.mxu0 0.0
    %1458 = vmatprep.subr.mxu0 0.0
    %1459 = vmatpush2.msra.mxu0 0.0
    %1460 = vmatprep.subr.mxu0 0.0
    %1461 = vmatpush2.msra.mxu0 0.0
    %1462 = vmatprep.subr.mxu0 0.0
    %1463 = vmatpush2.msra.mxu0 0.0
    %1464 = vmatprep.subr.mxu0 0.0
    %1465 = vmatpush2.msra.mxu0 0.0
    %1466 = vmatprep.subr.mxu0 0.0
    %1467 = vmatpush2.msra.mxu0 0.0
    %1468 = vmatprep.subr.mxu0 0.0
    %1469 = vmatpush2.msra.mxu0 0.0
    %1470 = vmatprep.subr.mxu0 0.0
    %1471 = vmatpush2.msra.mxu0 0.0
    %1472 = vmatprep.subr.mxu0 0.0
    %1473 = vmatpush2.msra.mxu0 0.0
    %1474 = vmatprep.subr.mxu0 0.0
    %1475 = vmatpush2.msra.mxu0 0.0
    %1476 = vmatprep.subr.mxu0 0.0
    %1477 = vmatpush2.msra.mxu0 0.0
    %1478 = vmatprep.subr.mxu0 0.0
    %1479 = vmatpush2.msra.mxu0 0.0
    %1480 = vmatprep.subr.mxu0 0.0
    %1481 = vmatpush2.msra.mxu0 0.0
    %1482 = vmatprep.subr.mxu0 0.0
    %1483 = vmatpush2.msra.mxu0 0.0
    %1484 = vmatprep.mubr.f32.mxu0 0.0
    %1485 = vmatmul.mubr.f32.gmra.mxu0 %v1418
    %v1486 = vpop.f32.mrf.mxu0
    %v1487 = vadd.f32 0.0, %v1486
    %v1488 = vpop.f32.mrf.mxu0
    %1489 = vdwg.mxu0
    %1491 = vrot.lane.b32.xlu0 %v1487, 8
    %v1492 = vpop.permute.xlu0 %1491
    %1494 = vst.msk [vmem:[#allocation2] sm:$0xff] %vm489, %v1492
    %1495 = vrot.lane.b32.xlu0 %v1039, 112
    %v1496 = vpop.permute.xlu0 %1495
    %1497 = vrot.lane.b32.xlu0 %v1127, 112
    %v1498 = vpop.permute.xlu0 %1497
    %1499 = vrot.lane.b32.xlu0 %v1132, 112
    %v1500 = vpop.permute.xlu0 %1499
    %v1501 = vsel %vm155, %v1496, 0
    %v1503 = vsel %vm155, %v1498, 0
    %v1505 = vsel %vm155, %v1500, 0
    %1507 = vmatprep.subr.mxu0 0.0
    %1508 = vmatpush1.xpose.msra.mxu0 0.0
    %1509 = vmatprep.subr.mxu0 0.0
    %1510 = vmatpush1.xpose.msra.mxu0 0.0
    %1511 = vmatprep.subr.mxu0 0.0
    %1512 = vmatpush1.xpose.msra.mxu0 0.0
    %1513 = vmatprep.subr.mxu0 0.0
    %1514 = vmatpush1.xpose.msra.mxu0 0.0
    %1515 = vmatprep.subr.mxu0 0.0
    %1516 = vmatpush1.xpose.msra.mxu0 0.0
    %1517 = vmatprep.subr.mxu0 0.0
    %1518 = vmatpush1.xpose.msra.mxu0 0.0
    %1519 = vmatprep.subr.mxu0 0.0
    %1520 = vmatpush1.xpose.msra.mxu0 0.0
    %1521 = vmatprep.subr.mxu0 0.0
    %1522 = vmatpush1.xpose.msra.mxu0 0.0
    %1523 = vmatprep.subr.mxu0 0.0
    %1524 = vmatpush1.xpose.msra.mxu0 0.0
    %1525 = vmatprep.subr.mxu0 0.0
    %1526 = vmatpush1.xpose.msra.mxu0 0.0
    %1527 = vmatprep.subr.mxu0 0.0
    %1528 = vmatpush1.xpose.msra.mxu0 0.0
    %1529 = vmatprep.subr.mxu0 0.0
    %1530 = vmatpush1.xpose.msra.mxu0 0.0
    %1531 = vmatprep.subr.mxu0 0.0
    %1532 = vmatpush1.xpose.msra.mxu0 0.0
    %1533 = vmatprep.subr.mxu0 0.0
    %1534 = vmatpush1.xpose.msra.mxu0 0.0
    %1535 = vmatprep.subr.mxu0 0.0
    %1536 = vmatpush1.xpose.msra.mxu0 %v1505
    %1537 = vmatprep.subr.mxu0 0.0
    %1538 = vmatpush1.xpose.msra.mxu0 %v1503
    %1539 = vmatprep.subr.mxu0 0.0
    %1540 = vmatpush2.xpose.msra.mxu0 0.0
    %1541 = vmatprep.subr.mxu0 0.0
    %1542 = vmatpush2.xpose.msra.mxu0 0.0
    %1543 = vmatprep.subr.mxu0 0.0
    %1544 = vmatpush2.xpose.msra.mxu0 0.0
    %1545 = vmatprep.subr.mxu0 0.0
    %1546 = vmatpush2.xpose.msra.mxu0 0.0
    %1547 = vmatprep.subr.mxu0 0.0
    %1548 = vmatpush2.xpose.msra.mxu0 0.0
    %1549 = vmatprep.subr.mxu0 0.0
    %1550 = vmatpush2.xpose.msra.mxu0 0.0
    %1551 = vmatprep.subr.mxu0 0.0
    %1552 = vmatpush2.xpose.msra.mxu0 0.0
    %1553 = vmatprep.subr.mxu0 0.0
    %1554 = vmatpush2.xpose.msra.mxu0 0.0
    %1555 = vmatprep.subr.mxu0 0.0
    %1556 = vmatpush2.xpose.msra.mxu0 0.0
    %1557 = vmatprep.subr.mxu0 0.0
    %1558 = vmatpush2.xpose.msra.mxu0 0.0
    %1559 = vmatprep.subr.mxu0 0.0
    %1560 = vmatpush2.xpose.msra.mxu0 0.0
    %1561 = vmatprep.subr.mxu0 0.0
    %1562 = vmatpush2.xpose.msra.mxu0 0.0
    %1563 = vmatprep.subr.mxu0 0.0
    %1564 = vmatpush2.xpose.msra.mxu0 0.0
    %1565 = vmatprep.subr.mxu0 0.0
    %1566 = vmatpush2.xpose.msra.mxu0 0.0
    %1567 = vmatprep.subr.mxu0 0.0
    %1568 = vmatpush2.xpose.msra.mxu0 0.0
    %1569 = vmatprep.subr.mxu0 0.0
    %1570 = vmatpush2.xpose.msra.mxu0 0.0
    %1571 = vmatprep.mubr.f32.mxu0 0.0
    %1572 = vmatmul.mubr.f32.gmra.mxu0 %v1501
    %v1573 = vpop.f32.mrf.mxu0
    %v1574 = vadd.f32 0.0, %v1573
    %v1575 = vpop.f32.mrf.mxu0
    %1576 = vdwg.mxu0
    %v1577 = vsel %vm1224, %v1574, -inf
    %1578 = vmax.xlane.f32.xlu0 %v1577
    %v1579 = vpop.xlane.xlu0 %1578
    %v1580 = vsub.f32 %v1574, %v1579
    %v1581 = vmul.f32 %v1580, 1.442695
    %v1582 = vpow.pop %v1581
    %v1583 = vsel %vm1224, %v1582, 0.0
    %1584 = vadd.xlane.f32.xlu0 %v1583
    %v1585 = vpop.xlane.xlu0 %1584
    %v1586 = vrcp.pop %v1585
    %v1587 = vmul.f32 %v1582, %v1586
    %1588 = vrot.lane.b32.xlu0 %v1137, 80
    %v1589 = vpop.permute.xlu0 %1588
    %1590 = vrot.lane.b32.xlu0 %v1142, 80
    %v1591 = vpop.permute.xlu0 %1590
    %v1595 = vsel %vm1224, %v1587, 0
    %1597 = vmatprep.subr.mxu0 0.0
    %1598 = vmatpush1.msra.mxu0 0.0
    %1599 = vmatprep.subr.mxu0 0.0
    %1600 = vmatpush1.msra.mxu0 0.0
    %1601 = vmatprep.subr.mxu0 0.0
    %1602 = vmatpush1.msra.mxu0 0.0
    %1603 = vmatprep.subr.mxu0 0.0
    %1604 = vmatpush1.msra.mxu0 0.0
    %1605 = vmatprep.subr.mxu0 0.0
    %1606 = vmatpush1.msra.mxu0 0.0
    %1607 = vmatprep.subr.mxu0 0.0
    %1608 = vmatpush1.msra.mxu0 0.0
    %1609 = vmatprep.subr.mxu0 0.0
    %1610 = vmatpush1.msra.mxu0 0.0
    %1611 = vmatprep.subr.mxu0 0.0
    %1612 = vmatpush1.msra.mxu0 0.0
    %1613 = vmatprep.subr.mxu0 0.0
    %1614 = vmatpush1.msra.mxu0 0.0
    %1615 = vmatprep.subr.mxu0 0.0
    %1616 = vmatpush1.msra.mxu0 0.0
    %1617 = vmatprep.subr.mxu0 0.0
    %1618 = vmatpush1.msra.mxu0 0.0
    %1619 = vmatprep.subr.mxu0 0.0
    %1620 = vmatpush1.msra.mxu0 0.0
    %1621 = vmatprep.subr.mxu0 0.0
    %1622 = vmatpush1.msra.mxu0 0.0
    %1623 = vmatprep.subr.mxu0 0.0
    %1624 = vmatpush1.msra.mxu0 0.0
    %1625 = vmatprep.subr.mxu0 0.0
    %1626 = vmatpush1.msra.mxu0 %v1591
    %1627 = vmatprep.subr.mxu0 0.0
    %1628 = vmatpush1.msra.mxu0 %v1589
    %1629 = vmatprep.subr.mxu0 0.0
    %1630 = vmatpush2.msra.mxu0 0.0
    %1631 = vmatprep.subr.mxu0 0.0
    %1632 = vmatpush2.msra.mxu0 0.0
    %1633 = vmatprep.subr.mxu0 0.0
    %1634 = vmatpush2.msra.mxu0 0.0
    %1635 = vmatprep.subr.mxu0 0.0
    %1636 = vmatpush2.msra.mxu0 0.0
    %1637 = vmatprep.subr.mxu0 0.0
    %1638 = vmatpush2.msra.mxu0 0.0
    %1639 = vmatprep.subr.mxu0 0.0
    %1640 = vmatpush2.msra.mxu0 0.0
    %1641 = vmatprep.subr.mxu0 0.0
    %1642 = vmatpush2.msra.mxu0 0.0
    %1643 = vmatprep.subr.mxu0 0.0
    %1644 = vmatpush2.msra.mxu0 0.0
    %1645 = vmatprep.subr.mxu0 0.0
    %1646 = vmatpush2.msra.mxu0 0.0
    %1647 = vmatprep.subr.mxu0 0.0
    %1648 = vmatpush2.msra.mxu0 0.0
    %1649 = vmatprep.subr.mxu0 0.0
    %1650 = vmatpush2.msra.mxu0 0.0
    %1651 = vmatprep.subr.mxu0 0.0
    %1652 = vmatpush2.msra.mxu0 0.0
    %1653 = vmatprep.subr.mxu0 0.0
    %1654 = vmatpush2.msra.mxu0 0.0
    %1655 = vmatprep.subr.mxu0 0.0
    %1656 = vmatpush2.msra.mxu0 0.0
    %1657 = vmatprep.subr.mxu0 0.0
    %1658 = vmatpush2.msra.mxu0 0.0
    %1659 = vmatprep.subr.mxu0 0.0
    %1660 = vmatpush2.msra.mxu0 0.0
    %1661 = vmatprep.mubr.f32.mxu0 0.0
    %1662 = vmatmul.mubr.f32.gmra.mxu0 %v1595
    %v1663 = vpop.f32.mrf.mxu0
    %v1664 = vadd.f32 0.0, %v1663
    %v1665 = vpop.f32.mrf.mxu0
    %1666 = vdwg.mxu0
    %1668 = vrot.lane.b32.xlu0 %v1664, 16
    %v1669 = vpop.permute.xlu0 %1668
    %1671 = vst.msk [vmem:[#allocation2] sm:$0xff] %vm660, %v1669
    %1672 = vrot.lane.b32.xlu0 %v1039, 104
    %v1673 = vpop.permute.xlu0 %1672
    %1674 = vrot.lane.b32.xlu0 %v1127, 104
    %v1675 = vpop.permute.xlu0 %1674
    %1676 = vrot.lane.b32.xlu0 %v1132, 104
    %v1677 = vpop.permute.xlu0 %1676
    %v1678 = vsel %vm155, %v1673, 0
    %v1680 = vsel %vm155, %v1675, 0
    %v1682 = vsel %vm155, %v1677, 0
    %1684 = vmatprep.subr.mxu0 0.0
    %1685 = vmatpush1.xpose.msra.mxu0 0.0
    %1686 = vmatprep.subr.mxu0 0.0
    %1687 = vmatpush1.xpose.msra.mxu0 0.0
    %1688 = vmatprep.subr.mxu0 0.0
    %1689 = vmatpush1.xpose.msra.mxu0 0.0
    %1690 = vmatprep.subr.mxu0 0.0
    %1691 = vmatpush1.xpose.msra.mxu0 0.0
    %1692 = vmatprep.subr.mxu0 0.0
    %1693 = vmatpush1.xpose.msra.mxu0 0.0
    %1694 = vmatprep.subr.mxu0 0.0
    %1695 = vmatpush1.xpose.msra.mxu0 0.0
    %1696 = vmatprep.subr.mxu0 0.0
    %1697 = vmatpush1.xpose.msra.mxu0 0.0
    %1698 = vmatprep.subr.mxu0 0.0
    %1699 = vmatpush1.xpose.msra.mxu0 0.0
    %1700 = vmatprep.subr.mxu0 0.0
    %1701 = vmatpush1.xpose.msra.mxu0 0.0
    %1702 = vmatprep.subr.mxu0 0.0
    %1703 = vmatpush1.xpose.msra.mxu0 0.0
    %1704 = vmatprep.subr.mxu0 0.0
    %1705 = vmatpush1.xpose.msra.mxu0 0.0
    %1706 = vmatprep.subr.mxu0 0.0
    %1707 = vmatpush1.xpose.msra.mxu0 0.0
    %1708 = vmatprep.subr.mxu0 0.0
    %1709 = vmatpush1.xpose.msra.mxu0 0.0
    %1710 = vmatprep.subr.mxu0 0.0
    %1711 = vmatpush1.xpose.msra.mxu0 0.0
    %1712 = vmatprep.subr.mxu0 0.0
    %1713 = vmatpush1.xpose.msra.mxu0 %v1682
    %1714 = vmatprep.subr.mxu0 0.0
    %1715 = vmatpush1.xpose.msra.mxu0 %v1680
    %1716 = vmatprep.subr.mxu0 0.0
    %1717 = vmatpush2.xpose.msra.mxu0 0.0
    %1718 = vmatprep.subr.mxu0 0.0
    %1719 = vmatpush2.xpose.msra.mxu0 0.0
    %1720 = vmatprep.subr.mxu0 0.0
    %1721 = vmatpush2.xpose.msra.mxu0 0.0
    %1722 = vmatprep.subr.mxu0 0.0
    %1723 = vmatpush2.xpose.msra.mxu0 0.0
    %1724 = vmatprep.subr.mxu0 0.0
    %1725 = vmatpush2.xpose.msra.mxu0 0.0
    %1726 = vmatprep.subr.mxu0 0.0
    %1727 = vmatpush2.xpose.msra.mxu0 0.0
    %1728 = vmatprep.subr.mxu0 0.0
    %1729 = vmatpush2.xpose.msra.mxu0 0.0
    %1730 = vmatprep.subr.mxu0 0.0
    %1731 = vmatpush2.xpose.msra.mxu0 0.0
    %1732 = vmatprep.subr.mxu0 0.0
    %1733 = vmatpush2.xpose.msra.mxu0 0.0
    %1734 = vmatprep.subr.mxu0 0.0
    %1735 = vmatpush2.xpose.msra.mxu0 0.0
    %1736 = vmatprep.subr.mxu0 0.0
    %1737 = vmatpush2.xpose.msra.mxu0 0.0
    %1738 = vmatprep.subr.mxu0 0.0
    %1739 = vmatpush2.xpose.msra.mxu0 0.0
    %1740 = vmatprep.subr.mxu0 0.0
    %1741 = vmatpush2.xpose.msra.mxu0 0.0
    %1742 = vmatprep.subr.mxu0 0.0
    %1743 = vmatpush2.xpose.msra.mxu0 0.0
    %1744 = vmatprep.subr.mxu0 0.0
    %1745 = vmatpush2.xpose.msra.mxu0 0.0
    %1746 = vmatprep.subr.mxu0 0.0
    %1747 = vmatpush2.xpose.msra.mxu0 0.0
    %1748 = vmatprep.mubr.f32.mxu0 0.0
    %1749 = vmatmul.mubr.f32.gmra.mxu0 %v1678
    %v1750 = vpop.f32.mrf.mxu0
    %v1751 = vadd.f32 0.0, %v1750
    %v1752 = vpop.f32.mrf.mxu0
    %1753 = vdwg.mxu0
    %v1754 = vsel %vm1224, %v1751, -inf
    %1755 = vmax.xlane.f32.xlu0 %v1754
    %v1756 = vpop.xlane.xlu0 %1755
    %v1757 = vsub.f32 %v1751, %v1756
    %v1758 = vmul.f32 %v1757, 1.442695
    %v1759 = vpow.pop %v1758
    %v1760 = vsel %vm1224, %v1759, 0.0
    %1761 = vadd.xlane.f32.xlu0 %v1760
    %v1762 = vpop.xlane.xlu0 %1761
    %v1763 = vrcp.pop %v1762
    %v1764 = vmul.f32 %v1759, %v1763
    %1765 = vrot.lane.b32.xlu0 %v1137, 72
    %v1766 = vpop.permute.xlu0 %1765
    %1767 = vrot.lane.b32.xlu0 %v1142, 72
    %v1768 = vpop.permute.xlu0 %1767
    %v1772 = vsel %vm1224, %v1764, 0
    %1774 = vmatprep.subr.mxu0 0.0
    %1775 = vmatpush1.msra.mxu0 0.0
    %1776 = vmatprep.subr.mxu0 0.0
    %1777 = vmatpush1.msra.mxu0 0.0
    %1778 = vmatprep.subr.mxu0 0.0
    %1779 = vmatpush1.msra.mxu0 0.0
    %1780 = vmatprep.subr.mxu0 0.0
    %1781 = vmatpush1.msra.mxu0 0.0
    %1782 = vmatprep.subr.mxu0 0.0
    %1783 = vmatpush1.msra.mxu0 0.0
    %1784 = vmatprep.subr.mxu0 0.0
    %1785 = vmatpush1.msra.mxu0 0.0
    %1786 = vmatprep.subr.mxu0 0.0
    %1787 = vmatpush1.msra.mxu0 0.0
    %1788 = vmatprep.subr.mxu0 0.0
    %1789 = vmatpush1.msra.mxu0 0.0
    %1790 = vmatprep.subr.mxu0 0.0
    %1791 = vmatpush1.msra.mxu0 0.0
    %1792 = vmatprep.subr.mxu0 0.0
    %1793 = vmatpush1.msra.mxu0 0.0
    %1794 = vmatprep.subr.mxu0 0.0
    %1795 = vmatpush1.msra.mxu0 0.0
    %1796 = vmatprep.subr.mxu0 0.0
    %1797 = vmatpush1.msra.mxu0 0.0
    %1798 = vmatprep.subr.mxu0 0.0
    %1799 = vmatpush1.msra.mxu0 0.0
    %1800 = vmatprep.subr.mxu0 0.0
    %1801 = vmatpush1.msra.mxu0 0.0
    %1802 = vmatprep.subr.mxu0 0.0
    %1803 = vmatpush1.msra.mxu0 %v1768
    %1804 = vmatprep.subr.mxu0 0.0
    %1805 = vmatpush1.msra.mxu0 %v1766
    %1806 = vmatprep.subr.mxu0 0.0
    %1807 = vmatpush2.msra.mxu0 0.0
    %1808 = vmatprep.subr.mxu0 0.0
    %1809 = vmatpush2.msra.mxu0 0.0
    %1810 = vmatprep.subr.mxu0 0.0
    %1811 = vmatpush2.msra.mxu0 0.0
    %1812 = vmatprep.subr.mxu0 0.0
    %1813 = vmatpush2.msra.mxu0 0.0
    %1814 = vmatprep.subr.mxu0 0.0
    %1815 = vmatpush2.msra.mxu0 0.0
    %1816 = vmatprep.subr.mxu0 0.0
    %1817 = vmatpush2.msra.mxu0 0.0
    %1818 = vmatprep.subr.mxu0 0.0
    %1819 = vmatpush2.msra.mxu0 0.0
    %1820 = vmatprep.subr.mxu0 0.0
    %1821 = vmatpush2.msra.mxu0 0.0
    %1822 = vmatprep.subr.mxu0 0.0
    %1823 = vmatpush2.msra.mxu0 0.0
    %1824 = vmatprep.subr.mxu0 0.0
    %1825 = vmatpush2.msra.mxu0 0.0
    %1826 = vmatprep.subr.mxu0 0.0
    %1827 = vmatpush2.msra.mxu0 0.0
    %1828 = vmatprep.subr.mxu0 0.0
    %1829 = vmatpush2.msra.mxu0 0.0
    %1830 = vmatprep.subr.mxu0 0.0
    %1831 = vmatpush2.msra.mxu0 0.0
    %1832 = vmatprep.subr.mxu0 0.0
    %1833 = vmatpush2.msra.mxu0 0.0
    %1834 = vmatprep.subr.mxu0 0.0
    %1835 = vmatpush2.msra.mxu0 0.0
    %1836 = vmatprep.subr.mxu0 0.0
    %1837 = vmatpush2.msra.mxu0 0.0
    %1838 = vmatprep.mubr.f32.mxu0 0.0
    %1839 = vmatmul.mubr.f32.gmra.mxu0 %v1772
    %v1840 = vpop.f32.mrf.mxu0
    %v1841 = vadd.f32 0.0, %v1840
    %v1842 = vpop.f32.mrf.mxu0
    %1843 = vdwg.mxu0
    %1845 = vrot.lane.b32.xlu0 %v1841, 24
    %v1846 = vpop.permute.xlu0 %1845
    %1848 = vst.msk [vmem:[#allocation2] sm:$0xff] %vm831, %v1846
    %v1849 = vld [vmem:[#allocation2] sm:$0xff]
    %v1850 = vld [vmem:[%s8] sm:$0xff]
    %v1851 = vld [vmem:[%s8 + $0x8] sm:$0xff]
    %v1852 = vld [vmem:[%s8 + $0x10] sm:$0xff]
    %v1853 = vld [vmem:[%s8 + $0x18] sm:$0xff]
    %v1855 = vsel %vm69, %v1849, 0
    %1857 = vmatprep.subr.mxu0 0.0
    %1858 = vmatpush1.msra.mxu0 0.0
    %1859 = vmatprep.subr.mxu0 0.0
    %1860 = vmatpush1.msra.mxu0 0.0
    %1861 = vmatprep.subr.mxu0 0.0
    %1862 = vmatpush1.msra.mxu0 0.0
    %1863 = vmatprep.subr.mxu0 0.0
    %1864 = vmatpush1.msra.mxu0 0.0
    %1865 = vmatprep.subr.mxu0 0.0
    %1866 = vmatpush1.msra.mxu0 0.0
    %1867 = vmatprep.subr.mxu0 0.0
    %1868 = vmatpush1.msra.mxu0 0.0
    %1869 = vmatprep.subr.mxu0 0.0
    %1870 = vmatpush1.msra.mxu0 0.0
    %1871 = vmatprep.subr.mxu0 0.0
    %1872 = vmatpush1.msra.mxu0 0.0
    %1873 = vmatprep.subr.mxu0 0.0
    %1874 = vmatpush1.msra.mxu0 0.0
    %1875 = vmatprep.subr.mxu0 0.0
    %1876 = vmatpush1.msra.mxu0 0.0
    %1877 = vmatprep.subr.mxu0 0.0
    %1878 = vmatpush1.msra.mxu0 0.0
    %1879 = vmatprep.subr.mxu0 0.0
    %1880 = vmatpush1.msra.mxu0 0.0
    %1881 = vmatprep.subr.mxu0 0.0
    %1882 = vmatpush1.msra.mxu0 %v1853
    %1883 = vmatprep.subr.mxu0 0.0
    %1884 = vmatpush1.msra.mxu0 %v1852
    %1885 = vmatprep.subr.mxu0 0.0
    %1886 = vmatpush1.msra.mxu0 %v1851
    %1887 = vmatprep.subr.mxu0 0.0
    %1888 = vmatpush1.msra.mxu0 %v1850
    %1889 = vmatprep.subr.mxu0 0.0
    %1890 = vmatpush2.msra.mxu0 0.0
    %1891 = vmatprep.subr.mxu0 0.0
    %1892 = vmatpush2.msra.mxu0 0.0
    %1893 = vmatprep.subr.mxu0 0.0
    %1894 = vmatpush2.msra.mxu0 0.0
    %1895 = vmatprep.subr.mxu0 0.0
    %1896 = vmatpush2.msra.mxu0 0.0
    %1897 = vmatprep.subr.mxu0 0.0
    %1898 = vmatpush2.msra.mxu0 0.0
    %1899 = vmatprep.subr.mxu0 0.0
    %1900 = vmatpush2.msra.mxu0 0.0
    %1901 = vmatprep.subr.mxu0 0.0
    %1902 = vmatpush2.msra.mxu0 0.0
    %1903 = vmatprep.subr.mxu0 0.0
    %1904 = vmatpush2.msra.mxu0 0.0
    %1905 = vmatprep.subr.mxu0 0.0
    %1906 = vmatpush2.msra.mxu0 0.0
    %1907 = vmatprep.subr.mxu0 0.0
    %1908 = vmatpush2.msra.mxu0 0.0
    %1909 = vmatprep.subr.mxu0 0.0
    %1910 = vmatpush2.msra.mxu0 0.0
    %1911 = vmatprep.subr.mxu0 0.0
    %1912 = vmatpush2.msra.mxu0 0.0
    %1913 = vmatprep.subr.mxu0 0.0
    %1914 = vmatpush2.msra.mxu0 0.0
    %1915 = vmatprep.subr.mxu0 0.0
    %1916 = vmatpush2.msra.mxu0 0.0
    %1917 = vmatprep.subr.mxu0 0.0
    %1918 = vmatpush2.msra.mxu0 0.0
    %1919 = vmatprep.subr.mxu0 0.0
    %1920 = vmatpush2.msra.mxu0 0.0
    %1921 = vmatprep.mubr.f32.mxu0 0.0
    %1922 = vmatmul.mubr.f32.gmra.mxu0 %v1855
    %v1923 = vpop.f32.mrf.mxu0
    %v1924 = vadd.f32 0.0, %v1923
    %v1925 = vpop.f32.mrf.mxu0
    %1926 = vdwg.mxu0
    %v1927 = vadd.f32 %v1924, %v958
    %v1928 = vadd.f32 %v1924, %v959
    %v1929 = vsel %vm69, %v1927, 0.0
    %1930 = vadd.xlane.f32.xlu0 %v1929
    %v1931 = vpop.xlane.xlu0 %1930
    %v1932 = vsel %vm69, %v1928, 0.0
    %1933 = vadd.xlane.f32.xlu0 %v1932
    %v1934 = vpop.xlane.xlu0 %1933
    %v1935 = vmul.f32 %v1931, %v921
    %v1936 = vmul.f32 %v1934, %v921
    %v1937 = vsub.f32 %v1927, %v1935
    %v1938 = vsub.f32 %v1928, %v1936
    %v1939 = vmul.f32 %v1937, %v1937
    %v1940 = vmul.f32 %v1938, %v1938
    %v1941 = vsel %vm69, %v1939, 0.0
    %1942 = vadd.xlane.f32.xlu0 %v1941
    %v1943 = vpop.xlane.xlu0 %1942
    %v1944 = vsel %vm69, %v1940, 0.0
    %1945 = vadd.xlane.f32.xlu0 %v1944
    %v1946 = vpop.xlane.xlu0 %1945
    %v1947 = vmul.f32 %v1943, %v921
    %v1948 = vmul.f32 %v1946, %v921
    %v1949 = vadd.f32 %v1947, 1e-05
    %v1950 = vadd.f32 %v1948, 1e-05
    %v1951 = vrsqrt.pop %v1949
    %v1952 = vrsqrt.pop %v1950
    %v1953 = vmul.f32 %v1937, %v1951
    %v1954 = vmul.f32 %v1938, %v1952
    %v1955 = vld [vmem:[%s11] sm:$0x1]
    %v1957 = vlaneseq
    %v1958 = vshrl.u32 %v1957, 7
    %v1959 = vsub.s32 0, %v1958
    %v1960 = vrot.slane %v1955, %v1959
    %v1962 = vmul.f32 %v1953, %v1960
    %v1963 = vmul.f32 %v1954, %v1960
    %v1964 = vld [vmem:[%s12] sm:$0x1]
    %v1966 = vlaneseq
    %v1967 = vshrl.u32 %v1966, 7
    %v1968 = vsub.s32 0, %v1967
    %v1969 = vrot.slane %v1964, %v1968
    %v1971 = vadd.f32 %v1962, %v1969
    %v1972 = vadd.f32 %v1963, %v1969
    %v1973 = vld [vmem:[%s15] sm:$0xff]
    %v1974 = vld [vmem:[%s15 + $0x8] sm:$0xff]
    %v1975 = vld [vmem:[%s15 + $0x10] sm:$0xff]
    %v1976 = vld [vmem:[%s15 + $0x18] sm:$0xff]
    %v1977 = vld [vmem:[%s16] sm:$0x1]
    %v1979 = vlaneseq
    %v1980 = vshrl.u32 %v1979, 7
    %v1981 = vsub.s32 0, %v1980
    %v1982 = vrot.slane %v1977, %v1981
    %v1985 = vsel %vm69, %v1971, 0
    %v1988 = vsel %vm69, %v1972, 0
    %1990 = vmatprep.subr.mxu0 0.0
    %1991 = vmatpush1.msra.mxu0 0.0
    %1992 = vmatprep.subr.mxu0 0.0
    %1993 = vmatpush1.msra.mxu0 0.0
    %1994 = vmatprep.subr.mxu0 0.0
    %1995 = vmatpush1.msra.mxu0 0.0
    %1996 = vmatprep.subr.mxu0 0.0
    %1997 = vmatpush1.msra.mxu0 0.0
    %1998 = vmatprep.subr.mxu0 0.0
    %1999 = vmatpush1.msra.mxu0 0.0
    %2000 = vmatprep.subr.mxu0 0.0
    %2001 = vmatpush1.msra.mxu0 0.0
    %2002 = vmatprep.subr.mxu0 0.0
    %2003 = vmatpush1.msra.mxu0 0.0
    %2004 = vmatprep.subr.mxu0 0.0
    %2005 = vmatpush1.msra.mxu0 0.0
    %2006 = vmatprep.subr.mxu0 0.0
    %2007 = vmatpush1.msra.mxu0 0.0
    %2008 = vmatprep.subr.mxu0 0.0
    %2009 = vmatpush1.msra.mxu0 0.0
    %2010 = vmatprep.subr.mxu0 0.0
    %2011 = vmatpush1.msra.mxu0 0.0
    %2012 = vmatprep.subr.mxu0 0.0
    %2013 = vmatpush1.msra.mxu0 0.0
    %2014 = vmatprep.subr.mxu0 0.0
    %2015 = vmatpush1.msra.mxu0 %v1976
    %2016 = vmatprep.subr.mxu0 0.0
    %2017 = vmatpush1.msra.mxu0 %v1975
    %2018 = vmatprep.subr.mxu0 0.0
    %2019 = vmatpush1.msra.mxu0 %v1974
    %2020 = vmatprep.subr.mxu0 0.0
    %2021 = vmatpush1.msra.mxu0 %v1973
    %2022 = vmatprep.subr.mxu0 0.0
    %2023 = vmatpush2.msra.mxu0 0.0
    %2024 = vmatprep.subr.mxu0 0.0
    %2025 = vmatpush2.msra.mxu0 0.0
    %2026 = vmatprep.subr.mxu0 0.0
    %2027 = vmatpush2.msra.mxu0 0.0
    %2028 = vmatprep.subr.mxu0 0.0
    %2029 = vmatpush2.msra.mxu0 0.0
    %2030 = vmatprep.subr.mxu0 0.0
    %2031 = vmatpush2.msra.mxu0 0.0
    %2032 = vmatprep.subr.mxu0 0.0
    %2033 = vmatpush2.msra.mxu0 0.0
    %2034 = vmatprep.subr.mxu0 0.0
    %2035 = vmatpush2.msra.mxu0 0.0
    %2036 = vmatprep.subr.mxu0 0.0
    %2037 = vmatpush2.msra.mxu0 0.0
    %2038 = vmatprep.subr.mxu0 0.0
    %2039 = vmatpush2.msra.mxu0 0.0
    %2040 = vmatprep.subr.mxu0 0.0
    %2041 = vmatpush2.msra.mxu0 0.0
    %2042 = vmatprep.subr.mxu0 0.0
    %2043 = vmatpush2.msra.mxu0 0.0
    %2044 = vmatprep.subr.mxu0 0.0
    %2045 = vmatpush2.msra.mxu0 0.0
    %2046 = vmatprep.subr.mxu0 0.0
    %2047 = vmatpush2.msra.mxu0 0.0
    %2048 = vmatprep.subr.mxu0 0.0
    %2049 = vmatpush2.msra.mxu0 0.0
    %2050 = vmatprep.subr.mxu0 0.0
    %2051 = vmatpush2.msra.mxu0 0.0
    %2052 = vmatprep.subr.mxu0 0.0
    %2053 = vmatpush2.msra.mxu0 0.0
    %2054 = vmatprep.mubr.f32.mxu0 0.0
    %2055 = vmatmul.mubr.f32.gmra.mxu0 %v1985
    %v2056 = vpop.f32.mrf.mxu0
    %v2057 = vadd.f32 %v1982, %v2056
    %v2058 = vpop.f32.mrf.mxu0
    %2059 = vmatprep.mubr.f32.mxu0 0.0
    %2060 = vmatmul.mubr.f32.gmra.mxu0 %v1988
    %v2061 = vpop.f32.mrf.mxu0
    %v2062 = vadd.f32 %v1982, %v2061
    %v2063 = vpop.f32.mrf.mxu0
    %2064 = vdwg.mxu0
    %v2065 = vmax.f32 %v2057, 0.0
    %v2066 = vmax.f32 %v2062, 0.0
    %v2067 = vld [vmem:[%s17] sm:$0xff]
    %v2068 = vld [vmem:[%s17 + $0x8] sm:$0xff]
    %v2069 = vld [vmem:[%s17 + $0x10] sm:$0xff]
    %v2070 = vld [vmem:[%s17 + $0x18] sm:$0xff]
    %v2071 = vld [vmem:[%s17 + $0x20] sm:$0xff]
    %v2072 = vld [vmem:[%s17 + $0x28] sm:$0xff]
    %v2073 = vld [vmem:[%s17 + $0x30] sm:$0xff]
    %v2074 = vld [vmem:[%s17 + $0x38] sm:$0xff]
    %v2075 = vld [vmem:[%s18] sm:$0x1]
    %v2077 = vlaneseq
    %v2078 = vshrl.u32 %v2077, 7
    %v2079 = vsub.s32 0, %v2078
    %v2080 = vrot.slane %v2075, %v2079
    %vm2082 = vcmask 523264
    %v2084 = vsel %vm2082, %v2065, 0
    %v2087 = vsel %vm2082, %v2066, 0
    %2089 = vmatprep.subr.mxu0 0.0
    %2090 = vmatpush1.msra.mxu0 0.0
    %2091 = vmatprep.subr.mxu0 0.0
    %2092 = vmatpush1.msra.mxu0 0.0
    %2093 = vmatprep.subr.mxu0 0.0
    %2094 = vmatpush1.msra.mxu0 0.0
    %2095 = vmatprep.subr.mxu0 0.0
    %2096 = vmatpush1.msra.mxu0 0.0
    %2097 = vmatprep.subr.mxu0 0.0
    %2098 = vmatpush1.msra.mxu0 0.0
    %2099 = vmatprep.subr.mxu0 0.0
    %2100 = vmatpush1.msra.mxu0 0.0
    %2101 = vmatprep.subr.mxu0 0.0
    %2102 = vmatpush1.msra.mxu0 0.0
    %2103 = vmatprep.subr.mxu0 0.0
    %2104 = vmatpush1.msra.mxu0 0.0
    %2105 = vmatprep.subr.mxu0 0.0
    %2106 = vmatpush1.msra.mxu0 %v2074
    %2107 = vmatprep.subr.mxu0 0.0
    %2108 = vmatpush1.msra.mxu0 %v2073
    %2109 = vmatprep.subr.mxu0 0.0
    %2110 = vmatpush1.msra.mxu0 %v2072
    %2111 = vmatprep.subr.mxu0 0.0
    %2112 = vmatpush1.msra.mxu0 %v2071
    %2113 = vmatprep.subr.mxu0 0.0
    %2114 = vmatpush1.msra.mxu0 %v2070
    %2115 = vmatprep.subr.mxu0 0.0
    %2116 = vmatpush1.msra.mxu0 %v2069
    %2117 = vmatprep.subr.mxu0 0.0
    %2118 = vmatpush1.msra.mxu0 %v2068
    %2119 = vmatprep.subr.mxu0 0.0
    %2120 = vmatpush1.msra.mxu0 %v2067
    %2121 = vmatprep.subr.mxu0 0.0
    %2122 = vmatpush2.msra.mxu0 0.0
    %2123 = vmatprep.subr.mxu0 0.0
    %2124 = vmatpush2.msra.mxu0 0.0
    %2125 = vmatprep.subr.mxu0 0.0
    %2126 = vmatpush2.msra.mxu0 0.0
    %2127 = vmatprep.subr.mxu0 0.0
    %2128 = vmatpush2.msra.mxu0 0.0
    %2129 = vmatprep.subr.mxu0 0.0
    %2130 = vmatpush2.msra.mxu0 0.0
    %2131 = vmatprep.subr.mxu0 0.0
    %2132 = vmatpush2.msra.mxu0 0.0
    %2133 = vmatprep.subr.mxu0 0.0
    %2134 = vmatpush2.msra.mxu0 0.0
    %2135 = vmatprep.subr.mxu0 0.0
    %2136 = vmatpush2.msra.mxu0 0.0
    %2137 = vmatprep.subr.mxu0 0.0
    %2138 = vmatpush2.msra.mxu0 0.0
    %2139 = vmatprep.subr.mxu0 0.0
    %2140 = vmatpush2.msra.mxu0 0.0
    %2141 = vmatprep.subr.mxu0 0.0
    %2142 = vmatpush2.msra.mxu0 0.0
    %2143 = vmatprep.subr.mxu0 0.0
    %2144 = vmatpush2.msra.mxu0 0.0
    %2145 = vmatprep.subr.mxu0 0.0
    %2146 = vmatpush2.msra.mxu0 0.0
    %2147 = vmatprep.subr.mxu0 0.0
    %2148 = vmatpush2.msra.mxu0 0.0
    %2149 = vmatprep.subr.mxu0 0.0
    %2150 = vmatpush2.msra.mxu0 0.0
    %2151 = vmatprep.subr.mxu0 0.0
    %2152 = vmatpush2.msra.mxu0 0.0
    %2153 = vmatprep.mubr.f32.mxu0 0.0
    %2154 = vmatmul.mubr.f32.gmra.mxu0 %v2084
    %v2155 = vpop.f32.mrf.mxu0
    %v2156 = vadd.f32 %v2080, %v2155
    %v2157 = vpop.f32.mrf.mxu0
    %2158 = vmatprep.mubr.f32.mxu0 0.0
    %2159 = vmatmul.mubr.f32.gmra.mxu0 %v2087
    %v2160 = vpop.f32.mrf.mxu0
    %v2161 = vadd.f32 %v2080, %v2160
    %v2162 = vpop.f32.mrf.mxu0
    %2163 = vdwg.mxu0
    %v2164 = vadd.f32 %v2156, %v1971
    %v2165 = vadd.f32 %v2161, %v1972
    %v2166 = vsel %vm69, %v2164, 0.0
    %2167 = vadd.xlane.f32.xlu0 %v2166
    %v2168 = vpop.xlane.xlu0 %2167
    %v2169 = vsel %vm69, %v2165, 0.0
    %2170 = vadd.xlane.f32.xlu0 %v2169
    %v2171 = vpop.xlane.xlu0 %2170
    %v2172 = vmul.f32 %v2168, %v921
    %v2173 = vmul.f32 %v2171, %v921
    %v2174 = vsub.f32 %v2164, %v2172
    %v2175 = vsub.f32 %v2165, %v2173
    %v2176 = vmul.f32 %v2174, %v2174
    %v2177 = vmul.f32 %v2175, %v2175
    %v2178 = vsel %vm69, %v2176, 0.0
    %2179 = vadd.xlane.f32.xlu0 %v2178
    %v2180 = vpop.xlane.xlu0 %2179
    %v2181 = vsel %vm69, %v2177, 0.0
    %2182 = vadd.xlane.f32.xlu0 %v2181
    %v2183 = vpop.xlane.xlu0 %2182
    %v2184 = vmul.f32 %v2180, %v921
    %v2185 = vmul.f32 %v2183, %v921
    %v2186 = vadd.f32 %v2184, 1e-05
    %v2187 = vadd.f32 %v2185, 1e-05
    %v2188 = vrsqrt.pop %v2186
    %v2189 = vrsqrt.pop %v2187
    %v2190 = vmul.f32 %v2174, %v2188
    %v2191 = vmul.f32 %v2175, %v2189
    %v2192 = vld [vmem:[%s13] sm:$0x1]
    %v2194 = vlaneseq
    %v2195 = vshrl.u32 %v2194, 7
    %v2196 = vsub.s32 0, %v2195
    %v2197 = vrot.slane %v2192, %v2196
    %v2199 = vmul.f32 %v2190, %v2197
    %v2200 = vmul.f32 %v2191, %v2197
    %v2201 = vld [vmem:[%s14] sm:$0x1]
    %v2203 = vlaneseq
    %v2204 = vshrl.u32 %v2203, 7
    %v2205 = vsub.s32 0, %v2204
    %v2206 = vrot.slane %v2201, %v2205
    %v2208 = vadd.f32 %v2199, %v2206
    %v2209 = vadd.f32 %v2200, %v2206
    %2210 = vst.msk [vmem:[#allocation3] sm:$0xff] %vm69, %v2208
    %2211 = vst.msk [vmem:[#allocation3 + $0x8] sm:$0xff] %vm69, %v2209
    // Predicated region
    $region78: #{decoder_layer.1} parent=1 // pred_check
      _
    $region79: #{decoder_layer.1} parent=1 // pred_check_branch
      %2213 = sbr.rel (0) target = $region81
    $region80: #{decoder_layer.1} parent=1 // pred_region
      %s2215 = ssub.s32 256, 256
      %2216 = vsyncadd [#allocation4], %s2215
      %s2217 = sshll.u32 [#allocation3], 4
      %s2218 = int_to_ptr.vmem [resolvable:$true] %s2217
      %2223 = dma.vmem_to_hbm [thread:$0]  %s2218, 256, %s19, [#allocation4], 128, 128, 8
    $region81: #{decoder_layer.1} parent=1 // pred_fallthru
      _
    // Predicated region
    $region82: #{decoder_layer.1} parent=1 // pred_check
      _
    $region83: #{decoder_layer.1} parent=1 // pred_check_branch
      %2225 = sbr.rel (0) target = $region85
    $region84: #{decoder_layer.1} parent=1 // pred_region
      %2226 = dma.done [#allocation4], 256
    $region85: #{decoder_layer.1} parent=1 // pred_fallthru
      _
    %2227 = vsyncpa [#allocation4], 1

</llo_original>
